<compile_context>
chip_gen: v7x
topology: tpu7x:2x2x1
jax: 0.10.0
libtpu: 0.0.40
codegen_flags: <defaults>
</compile_context>

<pallas_src>
import jax
import jax.numpy as jnp
import numpy as np
from jax.experimental import pallas as pl
from jax.experimental.pallas import tpu as pltpu


# ---------------------------------------------------------------------------
# Pallas kernel: one spatial tile of the fused gating + (ConvT o 1x1) matmul.
# ---------------------------------------------------------------------------
def ecam_kernel(x0_ref, x1_ref, x2_ref, x3_ref, att1_ref, att2_ref,
                wc_ref, bc_ref, out_ref):
    # xj_ref:   (1, TM, C)    bf16 spatial tile of feature map j
    # att1_ref: (1, 1, 4C)    f32  CBAM attention for the concat (ca1)
    # att2_ref: (1, 1, C)     f32  CBAM attention for intra      (ca2)
    # wc_ref:   (4C, 4*OC)    bf16 composed (ConvTranspose o 1x1) weights
    # bc_ref:   (1, 4*OC)     f32  composed bias
    # out_ref:  (1, TM, 4*OC) f32  lane-dense output tile (k = dy*2+dx major)
    a1 = att1_ref[0]                                    # (1, 4C)
    a2 = att2_ref[0]                                    # (1, C)
    C = a2.shape[-1]

    # Gating math in f32 (v5e has no bf16 VALU); only MXU operands are bf16.
    xs = [r[0].astype(jnp.float32) for r in (x0_ref, x1_ref, x2_ref, x3_ref)]
    intra = xs[0] + xs[1] + xs[2] + xs[3]               # (TM, C)
    ca2 = intra * a2                                    # (TM, C)

    # gated_j = (x_j * a1_j) * (x_j + ca2); lane-concatenate the four slices
    # (free when C % 128 == 0) -> ONE K=4C dot instead of four K=C dots.
    gated = jnp.concatenate(
        [(xs[j] * a1[:, j * C:(j + 1) * C]) * (xs[j] + ca2) for j in range(4)],
        axis=-1).astype(wc_ref.dtype)                   # (TM, 4C) bf16
    acc = jnp.dot(gated, wc_ref[...],
                  preferred_element_type=jnp.float32)   # (TM, 4*OC) f32
    out_ref[0] = acc + bc_ref[...]                      # bias added once


# ---------------------------------------------------------------------------
# Wrapper-side helpers (tiny O(HW*C) reductions + micro-FCs stay in XLA).
# ---------------------------------------------------------------------------
def _cbam_attention_from_stats(avg, mx, wa, wb):
    # avg, mx: (B, Cx). Shared squeeze-excitation FC on both pooled stats,
    # batched into one call; returns sigmoid(fc(avg) + fc(max)) -> (B, Cx).
    stat = jnp.stack([avg, mx], axis=1)                 # (B, 2, Cx)
    h = jnp.maximum(stat @ wa, 0.0) @ wb                # (B, 2, Cx)
    return jax.nn.sigmoid(h[:, 0] + h[:, 1])


def _vmem_bytes(tm, C, OC, act_bytes):
    # Per-step VMEM estimate of the pipelined buffers.
    C4 = 4 * C
    x_bufs = 4 * 2 * tm * C * act_bytes                 # 4 inputs, double-buffered
    o_bufs = 2 * tm * 4 * OC * 4                        # f32 output, double-buffered
    w_buf = C4 * 4 * OC * act_bytes + 4 * OC * 4        # wc / bc, single-buffered
    small = 2 * 2 * (C4 + C) * 4                        # attention vectors
    return x_bufs + o_bufs + w_buf + small


def ecam_forward(xs, params, tm=1024, compute_dtype=jnp.bfloat16):
    # xs: list of 4 arrays, each (B, H, W, C) (NHWC).
    B, H, W, C = xs[0].shape
    C4, HW = 4 * C, H * W
    OC = params["wf"].shape[1]

    # Activations streamed to the kernel in bf16 (halves HBM traffic, native
    # MXU dtype). The (B,HW,4C) concat / (B,HW,C) intra never hit HBM.
    xq = [x.astype(compute_dtype).reshape(B, HW, C) for x in xs]
    xf = [x.astype(jnp.float32) for x in xq]            # fused into reductions

    # CBAM pooling stats without materializing concat / intra:
    #   stats(concat) = concat(per-map stats);  mean(intra) = sum(means);
    #   max(intra) needs the elementwise sum, fused by XLA into the reduce.
    avg_j = [jnp.mean(x, axis=1) for x in xf]           # (B, C) each
    max_j = [jnp.max(x, axis=1) for x in xf]
    att1 = _cbam_attention_from_stats(
        jnp.concatenate(avg_j, axis=-1), jnp.concatenate(max_j, axis=-1),
        params["w1a"], params["w1b"])[:, None, :]        # (B, 1, 4C)
    att2 = _cbam_attention_from_stats(
        avg_j[0] + avg_j[1] + avg_j[2] + avg_j[3],
        jnp.max(xf[0] + xf[1] + xf[2] + xf[3], axis=1),
        params["w2a"], params["w2b"])[:, None, :]        # (B, 1, C)

    # Fold ConvTranspose2d(2x2, stride 2) + final 1x1 conv into one matmul:
    # column block k = dy*2+dx holds wup[k] @ wf.
    wup, bup, wf, bf = params["wup"], params["bup"], params["wf"], params["bf"]
    wc = jnp.concatenate([wup[k] @ wf for k in range(4)], axis=1)   # (4C, 4OC)
    wc = wc.astype(compute_dtype)
    bc = jnp.tile(bup @ wf + bf, (1, 4))                            # (1, 4OC) f32

    # Spatial tile: as large as the VMEM budget allows; keep >= 2 grid points
    # when B == 1 so both v7x TensorCores (megacore) get work.
    act_bytes = jnp.dtype(compute_dtype).itemsize
    tm = min(tm, HW)
    if B == 1 and HW >= 16:
        tm = min(tm, max(8, (HW // 2) // 8 * 8))
    if tm != HW:
        tm = max(8, tm // 8 * 8)
    vmem_budget = 40 * 1024 * 1024                      # headroom under v7x 64 MiB
    while _vmem_bytes(tm, C, OC, act_bytes) > vmem_budget and tm > 8:
        tm = max(8, (tm // 2) // 8 * 8)
    vmem_limit = int(min(64 * 1024 * 1024,
                         max(32 * 1024 * 1024,
                             2 * _vmem_bytes(tm, C, OC, act_bytes))))

    # NOTE: demo shapes keep HW % tm == 0; partial trailing tiles are safe
    # row-wise (every output row depends only on the same input row), the
    # padded rows lie outside the array and are clipped at write-back.
    grid = (B, pl.cdiv(HW, tm))
    x_spec = pl.BlockSpec((1, tm, C), lambda b, t: (b, t, 0))

    def _run(single_buffer_consts):
        pm = ({"pipeline_mode": pl.Buffered(1)} if single_buffer_consts else {})
        wc_spec = pl.BlockSpec((C4, 4 * OC), lambda b, t: (0, 0), **pm)
        bc_spec = pl.BlockSpec((1, 4 * OC), lambda b, t: (0, 0), **pm)
        return pl.pallas_call(
            ecam_kernel,
            out_shape=jax.ShapeDtypeStruct((B, HW, 4 * OC), jnp.float32),
            grid=grid,
            in_specs=[x_spec, x_spec, x_spec, x_spec,
                      pl.BlockSpec((1, 1, C4), lambda b, t: (b, 0, 0)),
                      pl.BlockSpec((1, 1, C), lambda b, t: (b, 0, 0)),
                      wc_spec, bc_spec],
            out_specs=pl.BlockSpec((1, tm, 4 * OC), lambda b, t: (b, t, 0)),
            compiler_params=pltpu.CompilerParams(
                dimension_semantics=("parallel", "parallel"),
                vmem_limit_bytes=vmem_limit),
        )(*xq, att1, att2, wc, bc)

    try:
        out = _run(True)      # constants single-buffered (saves VMEM on v7x)
    except Exception:
        out = _run(False)     # fallback if pipeline_mode is unsupported

    # (B, HW, 4*OC) -> (B, H, W, dy, dx, OC) -> (B, 2H, 2W, OC).
    out = out.reshape(B, H, W, 2, 2, OC).transpose(0, 1, 3, 2, 4, 5)
    return out.reshape(B, 2 * H, 2 * W, OC)


# ---------------------------------------------------------------------------
# Parameters & pure-JAX reference (original un-fused two-stage math).
# ---------------------------------------------------------------------------
def init_params(key, C, OC):
    # Shapes follow the PyTorch module, stored pre-transposed in matmul
    # (in, out) form.  ca1: Conv2d(4C,4C//16,1)/Conv2d(4C//16,4C,1), no bias.
    # ca2: Conv2d(C,C//4,1)/Conv2d(C//4,C,1), no bias.
    # up: ConvTranspose2d(4C,4C,2,stride=2) -> (4,4C,4C)+bias, k = dy*2+dx.
    # conv_final: Conv2d(4C,OC,1) -> (4C,OC)+bias.
    C4 = 4 * C
    hid1, hid2 = C4 // 16, C // 4
    ks = jax.random.split(key, 8)

    def nrm(k, shape, scale=0.1):
        return scale * jax.random.normal(k, shape, dtype=jnp.float32)

    return dict(
        w1a=nrm(ks[0], (C4, hid1)), w1b=nrm(ks[1], (hid1, C4)),
        w2a=nrm(ks[2], (C, hid2)), w2b=nrm(ks[3], (hid2, C)),
        wup=nrm(ks[4], (4, C4, C4)), bup=nrm(ks[5], (1, C4)),
        wf=nrm(ks[6], (C4, OC)), bf=nrm(ks[7], (1, OC)),
    )


def ecam_reference(xs, p):
    x = jnp.concatenate(xs, axis=-1)                    # (B, H, W, 4C)
    intra = xs[0] + xs[1] + xs[2] + xs[3]               # (B, H, W, C)

    def cbam(v, wa, wb):
        avg = jnp.mean(v, axis=(1, 2), keepdims=True)
        mx = jnp.max(v, axis=(1, 2), keepdims=True)
        fc = lambda u: jnp.maximum(u @ wa, 0.0) @ wb
        return v * jax.nn.sigmoid(fc(avg) + fc(mx))

    ca2 = cbam(intra, p["w2a"], p["w2b"])
    ca1 = cbam(x, p["w1a"], p["w1b"])
    gated = ca1 * (x + jnp.concatenate([ca2] * 4, axis=-1))
    B, H, W, _ = gated.shape
    OC = p["wf"].shape[1]
    zs = [(gated @ p["wup"][k] + p["bup"]) @ p["wf"] + p["bf"] for k in range(4)]
    z = jnp.stack(zs, axis=3)                           # (B, H, W, 4, OC)
    z = z.reshape(B, H, W, 2, 2, OC).transpose(0, 1, 3, 2, 4, 5)
    return z.reshape(B, 2 * H, 2 * W, OC)


if __name__ == "__main__":
    B, C, H, W, OC = 2, 8, 8, 8, 4      # 4C = 32 channels after concat, HW = 64
    key = jax.random.PRNGKey(0)
    kx, kp = jax.random.split(key)
    xkeys = jax.random.split(kx, 4)
    xs = [jax.random.normal(k, (B, H, W, C), dtype=jnp.float32) for k in xkeys]
    params = init_params(kp, C, OC)

    out = ecam_forward(xs, params)
    out = jax.block_until_ready(out)
    assert out.shape == (B, 2 * H, 2 * W, OC)

    # Reference consumes the same bf16-rounded activations the kernel streams;
    # the kernel keeps f32 gating + f32 MXU accumulation, so the remaining
    # mismatch is only the bf16 rounding of `gated` and of the composed wc.
    xs_q = [x.astype(jnp.bfloat16).astype(jnp.float32) for x in xs]
    ref = ecam_reference(xs_q, params)
    np.testing.assert_allclose(np.asarray(out), np.asarray(ref),
                               rtol=2e-2, atol=2e-2)
    print("KERNEL_OK")
</pallas_src>

<mosaic_0001>
module attributes {stable_mosaic.version = 11 : i64} {
  func.func @ecam_kernel(%arg0: i32, %arg1: i32, %arg2: memref<1x64x8xbf16, #tpu.memory_space<vmem>>, %arg3: memref<1x64x8xbf16, #tpu.memory_space<vmem>>, %arg4: memref<1x64x8xbf16, #tpu.memory_space<vmem>>, %arg5: memref<1x64x8xbf16, #tpu.memory_space<vmem>>, %arg6: memref<1x1x32xf32, #tpu.memory_space<vmem>>, %arg7: memref<1x1x8xf32, #tpu.memory_space<vmem>>, %arg8: memref<32x16xbf16, #tpu.memory_space<vmem>>, %arg9: memref<1x16xf32, #tpu.memory_space<vmem>>, %arg10: memref<1x64x16xf32, #tpu.memory_space<vmem>>) attributes {dimension_semantics = [#tpu.dimension_semantics<parallel>, #tpu.dimension_semantics<parallel>], iteration_bounds = array<i64: 2, 1>, scalar_prefetch = 0 : i64, scratch_operands = 0 : i64, tpu.core_type = #tpu.core_type<tc>, window_params = [{transform_indices = @transform_0, window_bounds = array<i64: 1, 64, 8>}, {transform_indices = @transform_1, window_bounds = array<i64: 1, 64, 8>}, {transform_indices = @transform_2, window_bounds = array<i64: 1, 64, 8>}, {transform_indices = @transform_3, window_bounds = array<i64: 1, 64, 8>}, {transform_indices = @transform_4, window_bounds = array<i64: 1, 1, 32>}, {transform_indices = @transform_5, window_bounds = array<i64: 1, 1, 8>}, {pipeline_mode = #tpu.pipeline_mode<synchronous>, transform_indices = @transform_6, window_bounds = array<i64: 32, 16>}, {pipeline_mode = #tpu.pipeline_mode<synchronous>, transform_indices = @transform_7, window_bounds = array<i64: 1, 16>}, {transform_indices = @transform_8, window_bounds = array<i64: 1, 64, 16>}]} {
    %c0 = arith.constant 0 : index
    %c0_0 = arith.constant 0 : index
    %c0_1 = arith.constant 0 : index
    %0 = vector.load %arg6[%c0, %c0_0, %c0_1] : memref<1x1x32xf32, #tpu.memory_space<vmem>>, vector<1x1x32xf32>
    %1 = vector.shape_cast %0 : vector<1x1x32xf32> to vector<1x32xf32>
    %c0_2 = arith.constant 0 : index
    %c0_3 = arith.constant 0 : index
    %c0_4 = arith.constant 0 : index
    %2 = vector.load %arg7[%c0_2, %c0_3, %c0_4] : memref<1x1x8xf32, #tpu.memory_space<vmem>>, vector<1x1x8xf32>
    %3 = vector.shape_cast %2 : vector<1x1x8xf32> to vector<1x8xf32>
    %c0_5 = arith.constant 0 : index
    %c0_6 = arith.constant 0 : index
    %c0_7 = arith.constant 0 : index
    %4 = vector.load %arg2[%c0_5, %c0_6, %c0_7] : memref<1x64x8xbf16, #tpu.memory_space<vmem>>, vector<1x64x8xbf16>
    %5 = vector.shape_cast %4 : vector<1x64x8xbf16> to vector<64x8xbf16>
    %6 = arith.extf %5 : vector<64x8xbf16> to vector<64x8xf32>
    %c0_8 = arith.constant 0 : index
    %c0_9 = arith.constant 0 : index
    %c0_10 = arith.constant 0 : index
    %7 = vector.load %arg3[%c0_8, %c0_9, %c0_10] : memref<1x64x8xbf16, #tpu.memory_space<vmem>>, vector<1x64x8xbf16>
    %8 = vector.shape_cast %7 : vector<1x64x8xbf16> to vector<64x8xbf16>
    %9 = arith.extf %8 : vector<64x8xbf16> to vector<64x8xf32>
    %c0_11 = arith.constant 0 : index
    %c0_12 = arith.constant 0 : index
    %c0_13 = arith.constant 0 : index
    %10 = vector.load %arg4[%c0_11, %c0_12, %c0_13] : memref<1x64x8xbf16, #tpu.memory_space<vmem>>, vector<1x64x8xbf16>
    %11 = vector.shape_cast %10 : vector<1x64x8xbf16> to vector<64x8xbf16>
    %12 = arith.extf %11 : vector<64x8xbf16> to vector<64x8xf32>
    %c0_14 = arith.constant 0 : index
    %c0_15 = arith.constant 0 : index
    %c0_16 = arith.constant 0 : index
    %13 = vector.load %arg5[%c0_14, %c0_15, %c0_16] : memref<1x64x8xbf16, #tpu.memory_space<vmem>>, vector<1x64x8xbf16>
    %14 = vector.shape_cast %13 : vector<1x64x8xbf16> to vector<64x8xbf16>
    %15 = arith.extf %14 : vector<64x8xbf16> to vector<64x8xf32>
    %16 = arith.addf %6, %9 : vector<64x8xf32>
    %17 = arith.addf %16, %12 : vector<64x8xf32>
    %18 = arith.addf %17, %15 : vector<64x8xf32>
    %19 = vector.broadcast %3 : vector<1x8xf32> to vector<64x8xf32>
    %20 = arith.mulf %18, %19 : vector<64x8xf32>
    %21 = vector.extract_strided_slice %1 {offsets = [0, 0], sizes = [1, 8], strides = [1, 1]} : vector<1x32xf32> to vector<1x8xf32>
    %22 = vector.broadcast %21 : vector<1x8xf32> to vector<64x8xf32>
    %23 = arith.mulf %6, %22 : vector<64x8xf32>
    %24 = arith.addf %6, %20 : vector<64x8xf32>
    %25 = arith.mulf %23, %24 : vector<64x8xf32>
    %26 = vector.extract_strided_slice %1 {offsets = [0, 8], sizes = [1, 8], strides = [1, 1]} : vector<1x32xf32> to vector<1x8xf32>
    %27 = vector.broadcast %26 : vector<1x8xf32> to vector<64x8xf32>
    %28 = arith.mulf %9, %27 : vector<64x8xf32>
    %29 = arith.addf %9, %20 : vector<64x8xf32>
    %30 = arith.mulf %28, %29 : vector<64x8xf32>
    %31 = vector.extract_strided_slice %1 {offsets = [0, 16], sizes = [1, 8], strides = [1, 1]} : vector<1x32xf32> to vector<1x8xf32>
    %32 = vector.broadcast %31 : vector<1x8xf32> to vector<64x8xf32>
    %33 = arith.mulf %12, %32 : vector<64x8xf32>
    %34 = arith.addf %12, %20 : vector<64x8xf32>
    %35 = arith.mulf %33, %34 : vector<64x8xf32>
    %36 = vector.extract_strided_slice %1 {offsets = [0, 24], sizes = [1, 8], strides = [1, 1]} : vector<1x32xf32> to vector<1x8xf32>
    %37 = vector.broadcast %36 : vector<1x8xf32> to vector<64x8xf32>
    %38 = arith.mulf %15, %37 : vector<64x8xf32>
    %39 = arith.addf %15, %20 : vector<64x8xf32>
    %40 = arith.mulf %38, %39 : vector<64x8xf32>
    %41 = tpu.concatenate %25, %30, %35, %40 in 1 : vector<64x8xf32>, vector<64x8xf32>, vector<64x8xf32>, vector<64x8xf32> -> vector<64x32xf32>
    %42 = arith.truncf %41 : vector<64x32xf32> to vector<64x32xbf16>
    %c0_17 = arith.constant 0 : index
    %c0_18 = arith.constant 0 : index
    %43 = vector.load %arg8[%c0_17, %c0_18] : memref<32x16xbf16, #tpu.memory_space<vmem>>, vector<32x16xbf16>
    %cst = arith.constant dense<0.000000e+00> : vector<64x16xf32>
    %44 = tpu.matmul %42, %43, %cst {dimension_numbers = #tpu.dot_dimension_numbers<[1], [0], [0], [1], [0, 0, 1, 1], [], []>} : vector<64x32xbf16>, vector<32x16xbf16>, vector<64x16xf32> -> vector<64x16xf32>
    %c0_19 = arith.constant 0 : index
    %c0_20 = arith.constant 0 : index
    %45 = vector.load %arg9[%c0_19, %c0_20] : memref<1x16xf32, #tpu.memory_space<vmem>>, vector<1x16xf32>
    %46 = vector.broadcast %45 : vector<1x16xf32> to vector<64x16xf32>
    %47 = arith.addf %44, %46 : vector<64x16xf32>
    %c0_21 = arith.constant 0 : index
    %c0_22 = arith.constant 0 : index
    %c0_23 = arith.constant 0 : index
    %48 = vector.load %arg10[%c0_21, %c0_22, %c0_23] : memref<1x64x16xf32, #tpu.memory_space<vmem>>, vector<1x64x16xf32>
    %49 = vector.shape_cast %48 : vector<1x64x16xf32> to vector<64x16xf32>
    %50 = vector.shape_cast %47 : vector<64x16xf32> to vector<1x64x16xf32>
    tpu.vector_store %arg10[%c0_21, %c0_22, %c0_23], %50 {strides = array<i32>} : memref<1x64x16xf32, #tpu.memory_space<vmem>>, vector<1x64x16xf32>,
    return
  }
  func.func @transform_0(%arg0: i32, %arg1: i32) -> (i32, i32, i32) {
    %c0_i32 = arith.constant 0 : i32
    %c0_i32_0 = arith.constant 0 : i32
    return %arg0, %arg1, %c0_i32 : i32, i32, i32
  }
  func.func @transform_1(%arg0: i32, %arg1: i32) -> (i32, i32, i32) {
    %c0_i32 = arith.constant 0 : i32
    %c0_i32_0 = arith.constant 0 : i32
    return %arg0, %arg1, %c0_i32 : i32, i32, i32
  }
  func.func @transform_2(%arg0: i32, %arg1: i32) -> (i32, i32, i32) {
    %c0_i32 = arith.constant 0 : i32
    %c0_i32_0 = arith.constant 0 : i32
    return %arg0, %arg1, %c0_i32 : i32, i32, i32
  }
  func.func @transform_3(%arg0: i32, %arg1: i32) -> (i32, i32, i32) {
    %c0_i32 = arith.constant 0 : i32
    %c0_i32_0 = arith.constant 0 : i32
    return %arg0, %arg1, %c0_i32 : i32, i32, i32
  }
  func.func @transform_4(%arg0: i32, %arg1: i32) -> (i32, i32, i32) {
    %c0_i32 = arith.constant 0 : i32
    %c0_i32_0 = arith.constant 0 : i32
    %c0_i32_1 = arith.constant 0 : i32
    return %arg0, %c0_i32, %c0_i32_0 : i32, i32, i32
  }
  func.func @transform_5(%arg0: i32, %arg1: i32) -> (i32, i32, i32) {
    %c0_i32 = arith.constant 0 : i32
    %c0_i32_0 = arith.constant 0 : i32
    %c0_i32_1 = arith.constant 0 : i32
    return %arg0, %c0_i32, %c0_i32_0 : i32, i32, i32
  }
  func.func @transform_6(%arg0: i32, %arg1: i32) -> (i32, i32) {
    %c0_i32 = arith.constant 0 : i32
    %c0_i32_0 = arith.constant 0 : i32
    %c0_i32_1 = arith.constant 0 : i32
    return %c0_i32, %c0_i32_0 : i32, i32
  }
  func.func @transform_7(%arg0: i32, %arg1: i32) -> (i32, i32) {
    %c0_i32 = arith.constant 0 : i32
    %c0_i32_0 = arith.constant 0 : i32
    %c0_i32_1 = arith.constant 0 : i32
    return %c0_i32, %c0_i32_0 : i32, i32
  }
  func.func @transform_8(%arg0: i32, %arg1: i32) -> (i32, i32, i32) {
    %c0_i32 = arith.constant 0 : i32
    %c0_i32_0 = arith.constant 0 : i32
    return %arg0, %arg1, %c0_i32 : i32, i32, i32
  }
}

module attributes {stable_mosaic.version = 11 : i64} {
  func.func @ecam_kernel(%arg0: i32, %arg1: i32, %arg2: memref<1x64x8xbf16, #tpu.memory_space<vmem>>, %arg3: memref<1x64x8xbf16, #tpu.memory_space<vmem>>, %arg4: memref<1x64x8xbf16, #tpu.memory_space<vmem>>, %arg5: memref<1x64x8xbf16, #tpu.memory_space<vmem>>, %arg6: memref<1x1x32xf32, #tpu.memory_space<vmem>>, %arg7: memref<1x1x8xf32, #tpu.memory_space<vmem>>, %arg8: memref<32x16xbf16, #tpu.memory_space<vmem>>, %arg9: memref<1x16xf32, #tpu.memory_space<vmem>>, %arg10: memref<1x64x16xf32, #tpu.memory_space<vmem>>) attributes {dimension_semantics = [#tpu.dimension_semantics<parallel>, #tpu.dimension_semantics<parallel>], iteration_bounds = array<i64: 2, 1>, scalar_prefetch = 0 : i64, scratch_operands = 0 : i64, tpu.core_type = #tpu.core_type<tc>, window_params = [{transform_indices = @transform_0, window_bounds = array<i64: 1, 64, 8>}, {transform_indices = @transform_1, window_bounds = array<i64: 1, 64, 8>}, {transform_indices = @transform_2, window_bounds = array<i64: 1, 64, 8>}, {transform_indices = @transform_3, window_bounds = array<i64: 1, 64, 8>}, {transform_indices = @transform_4, window_bounds = array<i64: 1, 1, 32>}, {transform_indices = @transform_5, window_bounds = array<i64: 1, 1, 8>}, {pipeline_mode = #tpu.pipeline_mode<synchronous>, transform_indices = @transform_6, window_bounds = array<i64: 32, 16>}, {pipeline_mode = #tpu.pipeline_mode<synchronous>, transform_indices = @transform_7, window_bounds = array<i64: 1, 16>}, {transform_indices = @transform_8, window_bounds = array<i64: 1, 64, 16>}]} {
    %c0 = arith.constant 0 : index
    %c0_0 = arith.constant 0 : index
    %c0_1 = arith.constant 0 : index
    %0 = vector.load %arg6[%c0, %c0_0, %c0_1] : memref<1x1x32xf32, #tpu.memory_space<vmem>>, vector<1x1x32xf32>
    %1 = vector.shape_cast %0 : vector<1x1x32xf32> to vector<1x32xf32>
    %c0_2 = arith.constant 0 : index
    %c0_3 = arith.constant 0 : index
    %c0_4 = arith.constant 0 : index
    %2 = vector.load %arg7[%c0_2, %c0_3, %c0_4] : memref<1x1x8xf32, #tpu.memory_space<vmem>>, vector<1x1x8xf32>
    %3 = vector.shape_cast %2 : vector<1x1x8xf32> to vector<1x8xf32>
    %c0_5 = arith.constant 0 : index
    %c0_6 = arith.constant 0 : index
    %c0_7 = arith.constant 0 : index
    %4 = vector.load %arg2[%c0_5, %c0_6, %c0_7] : memref<1x64x8xbf16, #tpu.memory_space<vmem>>, vector<1x64x8xbf16>
    %5 = vector.shape_cast %4 : vector<1x64x8xbf16> to vector<64x8xbf16>
    %6 = arith.extf %5 : vector<64x8xbf16> to vector<64x8xf32>
    %c0_8 = arith.constant 0 : index
    %c0_9 = arith.constant 0 : index
    %c0_10 = arith.constant 0 : index
    %7 = vector.load %arg3[%c0_8, %c0_9, %c0_10] : memref<1x64x8xbf16, #tpu.memory_space<vmem>>, vector<1x64x8xbf16>
    %8 = vector.shape_cast %7 : vector<1x64x8xbf16> to vector<64x8xbf16>
    %9 = arith.extf %8 : vector<64x8xbf16> to vector<64x8xf32>
    %c0_11 = arith.constant 0 : index
    %c0_12 = arith.constant 0 : index
    %c0_13 = arith.constant 0 : index
    %10 = vector.load %arg4[%c0_11, %c0_12, %c0_13] : memref<1x64x8xbf16, #tpu.memory_space<vmem>>, vector<1x64x8xbf16>
    %11 = vector.shape_cast %10 : vector<1x64x8xbf16> to vector<64x8xbf16>
    %12 = arith.extf %11 : vector<64x8xbf16> to vector<64x8xf32>
    %c0_14 = arith.constant 0 : index
    %c0_15 = arith.constant 0 : index
    %c0_16 = arith.constant 0 : index
    %13 = vector.load %arg5[%c0_14, %c0_15, %c0_16] : memref<1x64x8xbf16, #tpu.memory_space<vmem>>, vector<1x64x8xbf16>
    %14 = vector.shape_cast %13 : vector<1x64x8xbf16> to vector<64x8xbf16>
    %15 = arith.extf %14 : vector<64x8xbf16> to vector<64x8xf32>
    %16 = arith.addf %6, %9 : vector<64x8xf32>
    %17 = arith.addf %16, %12 : vector<64x8xf32>
    %18 = arith.addf %17, %15 : vector<64x8xf32>
    %19 = vector.broadcast %3 : vector<1x8xf32> to vector<64x8xf32>
    %20 = arith.mulf %18, %19 : vector<64x8xf32>
    %21 = vector.extract_strided_slice %1 {offsets = [0, 0], sizes = [1, 8], strides = [1, 1]} : vector<1x32xf32> to vector<1x8xf32>
    %22 = vector.broadcast %21 : vector<1x8xf32> to vector<64x8xf32>
    %23 = arith.mulf %6, %22 : vector<64x8xf32>
    %24 = arith.addf %6, %20 : vector<64x8xf32>
    %25 = arith.mulf %23, %24 : vector<64x8xf32>
    %26 = vector.extract_strided_slice %1 {offsets = [0, 8], sizes = [1, 8], strides = [1, 1]} : vector<1x32xf32> to vector<1x8xf32>
    %27 = vector.broadcast %26 : vector<1x8xf32> to vector<64x8xf32>
    %28 = arith.mulf %9, %27 : vector<64x8xf32>
    %29 = arith.addf %9, %20 : vector<64x8xf32>
    %30 = arith.mulf %28, %29 : vector<64x8xf32>
    %31 = vector.extract_strided_slice %1 {offsets = [0, 16], sizes = [1, 8], strides = [1, 1]} : vector<1x32xf32> to vector<1x8xf32>
    %32 = vector.broadcast %31 : vector<1x8xf32> to vector<64x8xf32>
    %33 = arith.mulf %12, %32 : vector<64x8xf32>
    %34 = arith.addf %12, %20 : vector<64x8xf32>
    %35 = arith.mulf %33, %34 : vector<64x8xf32>
    %36 = vector.extract_strided_slice %1 {offsets = [0, 24], sizes = [1, 8], strides = [1, 1]} : vector<1x32xf32> to vector<1x8xf32>
    %37 = vector.broadcast %36 : vector<1x8xf32> to vector<64x8xf32>
    %38 = arith.mulf %15, %37 : vector<64x8xf32>
    %39 = arith.addf %15, %20 : vector<64x8xf32>
    %40 = arith.mulf %38, %39 : vector<64x8xf32>
    %41 = tpu.concatenate %25, %30, %35, %40 in 1 : vector<64x8xf32>, vector<64x8xf32>, vector<64x8xf32>, vector<64x8xf32> -> vector<64x32xf32>
    %42 = arith.truncf %41 : vector<64x32xf32> to vector<64x32xbf16>
    %c0_17 = arith.constant 0 : index
    %c0_18 = arith.constant 0 : index
    %43 = vector.load %arg8[%c0_17, %c0_18] : memref<32x16xbf16, #tpu.memory_space<vmem>>, vector<32x16xbf16>
    %cst = arith.constant dense<0.000000e+00> : vector<64x16xf32>
    %44 = tpu.matmul %42, %43, %cst {dimension_numbers = #tpu.dot_dimension_numbers<[1], [0], [0], [1], [0, 0, 1, 1], [], []>} : vector<64x32xbf16>, vector<32x16xbf16>, vector<64x16xf32> -> vector<64x16xf32>
    %c0_19 = arith.constant 0 : index
    %c0_20 = arith.constant 0 : index
    %45 = vector.load %arg9[%c0_19, %c0_20] : memref<1x16xf32, #tpu.memory_space<vmem>>, vector<1x16xf32>
    %46 = vector.broadcast %45 : vector<1x16xf32> to vector<64x16xf32>
    %47 = arith.addf %44, %46 : vector<64x16xf32>
    %c0_21 = arith.constant 0 : index
    %c0_22 = arith.constant 0 : index
    %c0_23 = arith.constant 0 : index
    %48 = vector.load %arg10[%c0_21, %c0_22, %c0_23] : memref<1x64x16xf32, #tpu.memory_space<vmem>>, vector<1x64x16xf32>
    %49 = vector.shape_cast %48 : vector<1x64x16xf32> to vector<64x16xf32>
    %50 = vector.shape_cast %47 : vector<64x16xf32> to vector<1x64x16xf32>
    tpu.vector_store %arg10[%c0_21, %c0_22, %c0_23], %50 {strides = array<i32>} : memref<1x64x16xf32, #tpu.memory_space<vmem>>, vector<1x64x16xf32>,
    return
  }
  func.func @transform_0(%arg0: i32, %arg1: i32) -> (i32, i32, i32) {
    %c0_i32 = arith.constant 0 : i32
    %c0_i32_0 = arith.constant 0 : i32
    return %arg0, %arg1, %c0_i32 : i32, i32, i32
  }
  func.func @transform_1(%arg0: i32, %arg1: i32) -> (i32, i32, i32) {
    %c0_i32 = arith.constant 0 : i32
    %c0_i32_0 = arith.constant 0 : i32
    return %arg0, %arg1, %c0_i32 : i32, i32, i32
  }
  func.func @transform_2(%arg0: i32, %arg1: i32) -> (i32, i32, i32) {
    %c0_i32 = arith.constant 0 : i32
    %c0_i32_0 = arith.constant 0 : i32
    return %arg0, %arg1, %c0_i32 : i32, i32, i32
  }
  func.func @transform_3(%arg0: i32, %arg1: i32) -> (i32, i32, i32) {
    %c0_i32 = arith.constant 0 : i32
    %c0_i32_0 = arith.constant 0 : i32
    return %arg0, %arg1, %c0_i32 : i32, i32, i32
  }
  func.func @transform_4(%arg0: i32, %arg1: i32) -> (i32, i32, i32) {
    %c0_i32 = arith.constant 0 : i32
    %c0_i32_0 = arith.constant 0 : i32
    %c0_i32_1 = arith.constant 0 : i32
    return %arg0, %c0_i32, %c0_i32_0 : i32, i32, i32
  }
  func.func @transform_5(%arg0: i32, %arg1: i32) -> (i32, i32, i32) {
    %c0_i32 = arith.constant 0 : i32
    %c0_i32_0 = arith.constant 0 : i32
    %c0_i32_1 = arith.constant 0 : i32
    return %arg0, %c0_i32, %c0_i32_0 : i32, i32, i32
  }
  func.func @transform_6(%arg0: i32, %arg1: i32) -> (i32, i32) {
    %c0_i32 = arith.constant 0 : i32
    %c0_i32_0 = arith.constant 0 : i32
    %c0_i32_1 = arith.constant 0 : i32
    return %c0_i32, %c0_i32_0 : i32, i32
  }
  func.func @transform_7(%arg0: i32, %arg1: i32) -> (i32, i32) {
    %c0_i32 = arith.constant 0 : i32
    %c0_i32_0 = arith.constant 0 : i32
    %c0_i32_1 = arith.constant 0 : i32
    return %c0_i32, %c0_i32_0 : i32, i32
  }
  func.func @transform_8(%arg0: i32, %arg1: i32) -> (i32, i32, i32) {
    %c0_i32 = arith.constant 0 : i32
    %c0_i32_0 = arith.constant 0 : i32
    return %arg0, %arg1, %c0_i32 : i32, i32, i32
  }
}

</mosaic_0001>

<llo_original>
// kernel: tpu_custom_call.1
$region0: #{tpu_custom_call.1}
  #allocation0 [shape = 'u32[]', space=smem, size = 0x4, offset = 0x4, fixed_abs, tag = 'smem constant byte address 0x4 - core index']
  #allocation1 [shape = 'u32[144,128]{1,0:T(1,128)}', space=vmem, size = 0x12000, scoped, tag = 'internal scratch']
  %s0 = inlined_call_operand.vmem [shape: bf16[2,64,8], index: 0, kind: input, shape index: {}]
  %s1 = inlined_call_operand.vmem [shape: bf16[2,64,8], index: 1, kind: input, shape index: {}]
  %s2 = inlined_call_operand.vmem [shape: bf16[2,64,8], index: 2, kind: input, shape index: {}]
  %s3 = inlined_call_operand.vmem [shape: bf16[2,64,8], index: 3, kind: input, shape index: {}]
  %s4 = inlined_call_operand.vmem [shape: f32[2,1,32], index: 4, kind: input, shape index: {}]
  %s5 = inlined_call_operand.vmem [shape: f32[2,1,8], index: 5, kind: input, shape index: {}]
  %s6 = inlined_call_operand.vmem [shape: bf16[32,16], index: 6, kind: input, shape index: {}]
  %s7 = inlined_call_operand.vmem [shape: f32[1,16], index: 7, kind: input, shape index: {}]
  %s8 = inlined_call_operand.vmem [shape: f32[2,64,16], index: 8, kind: output, shape index: {}]
  %s9 = sld [smem:[#allocation0]]
  $region65: #{tpu_custom_call.1} parent=0
    _
  %s11 = ssub.s32 1, %s9
  %s12 = scalar_select 0, %s11, %s9
  loop: start=0, step=1, limit=4
  $region2: #{tpu_custom_call.1} parent=0 // loop_pre_header
    _
  $region3: #{tpu_custom_call.1} parent=0 // loop_header
    %s14 = sphi 0, %s18
    %p15 = scmp.ge.s32.totalorder %s14, 4
    %s21 = sphi 0, %s33
    %s22 = sphi 0, %s29
    %s23 = sphi 0, %s21
    %s24 = sphi 0, %s22
    %s25 = sphi 0, %s23
    %s26 = sphi 0, %s24
    %s38 = sphi 0, %s40
    %s41 = sphi 0, %s38
    %s42 = sphi 0, %s41
    %s58 = sphi 0, %s42
    %s66 = sphi 0, %s68
    %s69 = sphi 0, %s66
    %s70 = sphi 0, %s69
    %s86 = sphi 0, %s70
    %s94 = sphi 0, %s96
    %s97 = sphi 0, %s94
    %s98 = sphi 0, %s97
    %s114 = sphi 0, %s98
    %s122 = sphi 0, %s124
    %s125 = sphi 0, %s122
    %s126 = sphi 0, %s125
    %s142 = sphi 0, %s126
    %s148 = sphi 0, %s150
    %s151 = sphi 0, %s148
    %s152 = sphi 0, %s151
    %s168 = sphi 0, %s152
    %s174 = sphi 0, %s176
    %s177 = sphi 0, %s174
    %s178 = sphi 0, %s177
    %s194 = sphi 0, %s178
    %s198 = sphi 0, %s198
    %s200 = sphi 0, %s198
    %s201 = sphi 0, %s200
    %s215 = sphi 0, %s201
    %s219 = sphi 0, %s219
    %s221 = sphi 0, %s219
    %s222 = sphi 0, %s221
    %s236 = sphi 0, %s222
    %s244 = sphi 0, %s246
    %s247 = sphi 0, %s244
    %s248 = sphi 0, %s247
    %s264 = sphi 0, %s248
  $region4: #{tpu_custom_call.1} parent=0 // loop_header_branch
    %17 = sbr.rel (%p15) target = $region8
  $region5: #{tpu_custom_call.1} parent=0 // loop_body
    %s19 = ssub.s32 %s14, 1
    %s20 = ssub.s32 %s14, 2
    %s27 = sadd.s32 1, %s22
    %p28 = scmp.ge.s32.totalorder %s27, 1
    %s29 = scalar_select %p28, 0, %s27
    %s30 = sadd.s32 1, %s21
    %s31 = scalar_select %p28, %s30, %s21
    %p32 = scmp.ge.s32.totalorder %s31, 2
    %s33 = scalar_select %p32, 0, %s31
    %s34 = ssub.s32 %s21, %s33
    %s35 = ssub.s32 %s22, %s29
    %s36 = sor.u32 %s34, %s35
    %p37 = scmp.eq.s32.totalorder %s36, 0
    %s39 = sadd.s32 %s38, 1
    %s40 = scalar_select %p37, %s38, %s39
    %p43 = pneg %p37
    %p44 = scmp.eq.s32.totalorder %s14, 1
    %p45 = por %p43, %p44
    %p46 = scmp.ne.s32.totalorder %s38, %s41
    %p47 = scmp.eq.s32.totalorder %s14, 0
    %p48 = por %p46, %p47
    %p49 = scmp.ne.s32.totalorder %s38, %s41
    %p50 = scmp.eq.s32.totalorder %s19, 1
    %p51 = por %p49, %p50
    %p52 = scmp.ne.s32.totalorder %s41, %s42
    %p53 = scmp.eq.s32.totalorder %s19, 0
    %p54 = por %p52, %p53
    %p55 = scmp.ne.s32.totalorder %s41, %s42
    %p56 = scmp.eq.s32.totalorder %s20, 1
    %p57 = por %p55, %p56
    %p59 = scmp.ne.s32.totalorder %s42, %s58
    %p60 = scmp.eq.s32.totalorder %s20, 0
    %p61 = por %p59, %p60
    %s62 = ssub.s32 %s21, %s33
    %s63 = ssub.s32 %s22, %s29
    %s64 = sor.u32 %s62, %s63
    %p65 = scmp.eq.s32.totalorder %s64, 0
    %s67 = sadd.s32 %s66, 1
    %s68 = scalar_select %p65, %s66, %s67
    %p71 = pneg %p65
    %p72 = scmp.eq.s32.totalorder %s14, 1
    %p73 = por %p71, %p72
    %p74 = scmp.ne.s32.totalorder %s66, %s69
    %p75 = scmp.eq.s32.totalorder %s14, 0
    %p76 = por %p74, %p75
    %p77 = scmp.ne.s32.totalorder %s66, %s69
    %p78 = scmp.eq.s32.totalorder %s19, 1
    %p79 = por %p77, %p78
    %p80 = scmp.ne.s32.totalorder %s69, %s70
    %p81 = scmp.eq.s32.totalorder %s19, 0
    %p82 = por %p80, %p81
    %p83 = scmp.ne.s32.totalorder %s69, %s70
    %p84 = scmp.eq.s32.totalorder %s20, 1
    %p85 = por %p83, %p84
    %p87 = scmp.ne.s32.totalorder %s70, %s86
    %p88 = scmp.eq.s32.totalorder %s20, 0
    %p89 = por %p87, %p88
    %s90 = ssub.s32 %s21, %s33
    %s91 = ssub.s32 %s22, %s29
    %s92 = sor.u32 %s90, %s91
    %p93 = scmp.eq.s32.totalorder %s92, 0
    %s95 = sadd.s32 %s94, 1
    %s96 = scalar_select %p93, %s94, %s95
    %p99 = pneg %p93
    %p100 = scmp.eq.s32.totalorder %s14, 1
    %p101 = por %p99, %p100
    %p102 = scmp.ne.s32.totalorder %s94, %s97
    %p103 = scmp.eq.s32.totalorder %s14, 0
    %p104 = por %p102, %p103
    %p105 = scmp.ne.s32.totalorder %s94, %s97
    %p106 = scmp.eq.s32.totalorder %s19, 1
    %p107 = por %p105, %p106
    %p108 = scmp.ne.s32.totalorder %s97, %s98
    %p109 = scmp.eq.s32.totalorder %s19, 0
    %p110 = por %p108, %p109
    %p111 = scmp.ne.s32.totalorder %s97, %s98
    %p112 = scmp.eq.s32.totalorder %s20, 1
    %p113 = por %p111, %p112
    %p115 = scmp.ne.s32.totalorder %s98, %s114
    %p116 = scmp.eq.s32.totalorder %s20, 0
    %p117 = por %p115, %p116
    %s118 = ssub.s32 %s21, %s33
    %s119 = ssub.s32 %s22, %s29
    %s120 = sor.u32 %s118, %s119
    %p121 = scmp.eq.s32.totalorder %s120, 0
    %s123 = sadd.s32 %s122, 1
    %s124 = scalar_select %p121, %s122, %s123
    %p127 = pneg %p121
    %p128 = scmp.eq.s32.totalorder %s14, 1
    %p129 = por %p127, %p128
    %p130 = scmp.ne.s32.totalorder %s122, %s125
    %p131 = scmp.eq.s32.totalorder %s14, 0
    %p132 = por %p130, %p131
    %p133 = scmp.ne.s32.totalorder %s122, %s125
    %p134 = scmp.eq.s32.totalorder %s19, 1
    %p135 = por %p133, %p134
    %p136 = scmp.ne.s32.totalorder %s125, %s126
    %p137 = scmp.eq.s32.totalorder %s19, 0
    %p138 = por %p136, %p137
    %p139 = scmp.ne.s32.totalorder %s125, %s126
    %p140 = scmp.eq.s32.totalorder %s20, 1
    %p141 = por %p139, %p140
    %p143 = scmp.ne.s32.totalorder %s126, %s142
    %p144 = scmp.eq.s32.totalorder %s20, 0
    %p145 = por %p143, %p144
    %s146 = ssub.s32 %s21, %s33
    %p147 = scmp.eq.s32.totalorder %s146, 0
    %s149 = sadd.s32 %s148, 1
    %s150 = scalar_select %p147, %s148, %s149
    %p153 = pneg %p147
    %p154 = scmp.eq.s32.totalorder %s14, 1
    %p155 = por %p153, %p154
    %p156 = scmp.ne.s32.totalorder %s148, %s151
    %p157 = scmp.eq.s32.totalorder %s14, 0
    %p158 = por %p156, %p157
    %p159 = scmp.ne.s32.totalorder %s148, %s151
    %p160 = scmp.eq.s32.totalorder %s19, 1
    %p161 = por %p159, %p160
    %p162 = scmp.ne.s32.totalorder %s151, %s152
    %p163 = scmp.eq.s32.totalorder %s19, 0
    %p164 = por %p162, %p163
    %p165 = scmp.ne.s32.totalorder %s151, %s152
    %p166 = scmp.eq.s32.totalorder %s20, 1
    %p167 = por %p165, %p166
    %p169 = scmp.ne.s32.totalorder %s152, %s168
    %p170 = scmp.eq.s32.totalorder %s20, 0
    %p171 = por %p169, %p170
    %s172 = ssub.s32 %s21, %s33
    %p173 = scmp.eq.s32.totalorder %s172, 0
    %s175 = sadd.s32 %s174, 1
    %s176 = scalar_select %p173, %s174, %s175
    %p179 = pneg %p173
    %p180 = scmp.eq.s32.totalorder %s14, 1
    %p181 = por %p179, %p180
    %p182 = scmp.ne.s32.totalorder %s174, %s177
    %p183 = scmp.eq.s32.totalorder %s14, 0
    %p184 = por %p182, %p183
    %p185 = scmp.ne.s32.totalorder %s174, %s177
    %p186 = scmp.eq.s32.totalorder %s19, 1
    %p187 = por %p185, %p186
    %p188 = scmp.ne.s32.totalorder %s177, %s178
    %p189 = scmp.eq.s32.totalorder %s19, 0
    %p190 = por %p188, %p189
    %p191 = scmp.ne.s32.totalorder %s177, %s178
    %p192 = scmp.eq.s32.totalorder %s20, 1
    %p193 = por %p191, %p192
    %p195 = scmp.ne.s32.totalorder %s178, %s194
    %p196 = scmp.eq.s32.totalorder %s20, 0
    %p197 = por %p195, %p196
    %s199 = sadd.s32 %s198, 1
    %p202 = scmp.eq.s32.totalorder %s14, 1
    %p203 = scmp.ne.s32.totalorder %s198, %s200
    %p204 = scmp.eq.s32.totalorder %s14, 0
    %p205 = por %p203, %p204
    %p206 = scmp.ne.s32.totalorder %s198, %s200
    %p207 = scmp.eq.s32.totalorder %s19, 1
    %p208 = por %p206, %p207
    %p209 = scmp.ne.s32.totalorder %s200, %s201
    %p210 = scmp.eq.s32.totalorder %s19, 0
    %p211 = por %p209, %p210
    %p212 = scmp.ne.s32.totalorder %s200, %s201
    %p213 = scmp.eq.s32.totalorder %s20, 1
    %p214 = por %p212, %p213
    %p216 = scmp.ne.s32.totalorder %s201, %s215
    %p217 = scmp.eq.s32.totalorder %s20, 0
    %p218 = por %p216, %p217
    %s220 = sadd.s32 %s219, 1
    %p223 = scmp.eq.s32.totalorder %s14, 1
    %p224 = scmp.ne.s32.totalorder %s219, %s221
    %p225 = scmp.eq.s32.totalorder %s14, 0
    %p226 = por %p224, %p225
    %p227 = scmp.ne.s32.totalorder %s219, %s221
    %p228 = scmp.eq.s32.totalorder %s19, 1
    %p229 = por %p227, %p228
    %p230 = scmp.ne.s32.totalorder %s221, %s222
    %p231 = scmp.eq.s32.totalorder %s19, 0
    %p232 = por %p230, %p231
    %p233 = scmp.ne.s32.totalorder %s221, %s222
    %p234 = scmp.eq.s32.totalorder %s20, 1
    %p235 = por %p233, %p234
    %p237 = scmp.ne.s32.totalorder %s222, %s236
    %p238 = scmp.eq.s32.totalorder %s20, 0
    %p239 = por %p237, %p238
    %s240 = ssub.s32 %s21, %s33
    %s241 = ssub.s32 %s22, %s29
    %s242 = sor.u32 %s240, %s241
    %p243 = scmp.eq.s32.totalorder %s242, 0
    %s245 = sadd.s32 %s244, 1
    %s246 = scalar_select %p243, %s244, %s245
    %p249 = pneg %p243
    %p250 = scmp.eq.s32.totalorder %s14, 1
    %p251 = por %p249, %p250
    %p252 = scmp.ne.s32.totalorder %s244, %s247
    %p253 = scmp.eq.s32.totalorder %s14, 0
    %p254 = por %p252, %p253
    %p255 = scmp.ne.s32.totalorder %s244, %s247
    %p256 = scmp.eq.s32.totalorder %s19, 1
    %p257 = por %p255, %p256
    %p258 = scmp.ne.s32.totalorder %s247, %s248
    %p259 = scmp.eq.s32.totalorder %s19, 0
    %p260 = por %p258, %p259
    %p261 = scmp.ne.s32.totalorder %s247, %s248
    %p262 = scmp.eq.s32.totalorder %s20, 1
    %p263 = por %p261, %p262
    %p265 = scmp.ne.s32.totalorder %s248, %s264
    %p266 = scmp.eq.s32.totalorder %s20, 0
    %p267 = por %p265, %p266
    %p268 = scmp.le.s32.totalorder 1, %s14
    %p269 = scmp.lt.s32.totalorder %s14, 3
    %p270 = pnand %p268, %p269
    %p271 = pneg %p270
    // Predicated region
    $region9: #{tpu_custom_call.1} parent=5 // pred_check
      _
    $region10: #{tpu_custom_call.1} parent=5 // pred_check_branch
      %273 = sbr.rel (%p270) target = $region12
    $region11: #{tpu_custom_call.1} parent=5 // pred_region
      %s274 = ssub.s32 %s14, 1
      // Predicated region
      $region13: #{tpu_custom_call.1} parent=11 // pred_check
        %p275 = pneg %p211
      $region14: #{tpu_custom_call.1} parent=11 // pred_check_branch
        %277 = sbr.rel (%p275) target = $region16
      $region15: #{tpu_custom_call.1} parent=11 // pred_region
        _
      $region16: #{tpu_custom_call.1} parent=11 // pred_fallthru
        _
      // Predicated region
      $region17: #{tpu_custom_call.1} parent=11 // pred_check
        %p278 = pneg %p232
      $region18: #{tpu_custom_call.1} parent=11 // pred_check_branch
        %280 = sbr.rel (%p278) target = $region20
      $region19: #{tpu_custom_call.1} parent=11 // pred_region
        _
      $region20: #{tpu_custom_call.1} parent=11 // pred_fallthru
        _
    $region12: #{tpu_custom_call.1} parent=5 // pred_fallthru
      _
    %p281 = scmp.lt.s32.totalorder %s14, 2
    // Predicated region
    $region21: #{tpu_custom_call.1} parent=5 // pred_check
      %p282 = pneg %p281
    $region22: #{tpu_custom_call.1} parent=5 // pred_check_branch
      %284 = sbr.rel (%p282) target = $region24
    $region23: #{tpu_custom_call.1} parent=5 // pred_region
      // Predicated region
      $region25: #{tpu_custom_call.1} parent=23 // pred_check
        %p285 = pneg %p48
      $region26: #{tpu_custom_call.1} parent=23 // pred_check_branch
        %287 = sbr.rel (%p285) target = $region28
      $region27: #{tpu_custom_call.1} parent=23 // pred_region
        %s288 = smul.u32 8, %s22
        %p289 = scmp.lt.s32.totalorder %s21, 1
        %s290 = scalar_select %p289, %s21, 1
        %p291 = scmp.lt.s32.totalorder %s288, 7
        %s292 = scalar_select %p291, %s288, 7
        %s293 = smul.addr %s290, 8
        %s294 = sadd.s32 %s292, %s293
        %s295 = smul.addr %s294, 4
        %s296 = scalar_lea.vmem %s0, %s295
        %s297 = smul.u32 8, %s22
      $region28: #{tpu_custom_call.1} parent=23 // pred_fallthru
        _
      // Predicated region
      $region29: #{tpu_custom_call.1} parent=23 // pred_check
        %p298 = pneg %p76
      $region30: #{tpu_custom_call.1} parent=23 // pred_check_branch
        %300 = sbr.rel (%p298) target = $region32
      $region31: #{tpu_custom_call.1} parent=23 // pred_region
        %s301 = smul.u32 8, %s22
        %p302 = scmp.lt.s32.totalorder %s21, 1
        %s303 = scalar_select %p302, %s21, 1
        %p304 = scmp.lt.s32.totalorder %s301, 7
        %s305 = scalar_select %p304, %s301, 7
        %s306 = smul.addr %s303, 8
        %s307 = sadd.s32 %s305, %s306
        %s308 = smul.addr %s307, 4
        %s309 = scalar_lea.vmem %s1, %s308
        %s310 = smul.u32 8, %s22
      $region32: #{tpu_custom_call.1} parent=23 // pred_fallthru
        _
      // Predicated region
      $region33: #{tpu_custom_call.1} parent=23 // pred_check
        %p311 = pneg %p104
      $region34: #{tpu_custom_call.1} parent=23 // pred_check_branch
        %313 = sbr.rel (%p311) target = $region36
      $region35: #{tpu_custom_call.1} parent=23 // pred_region
        %s314 = smul.u32 8, %s22
        %p315 = scmp.lt.s32.totalorder %s21, 1
        %s316 = scalar_select %p315, %s21, 1
        %p317 = scmp.lt.s32.totalorder %s314, 7
        %s318 = scalar_select %p317, %s314, 7
        %s319 = smul.addr %s316, 8
        %s320 = sadd.s32 %s318, %s319
        %s321 = smul.addr %s320, 4
        %s322 = scalar_lea.vmem %s2, %s321
        %s323 = smul.u32 8, %s22
      $region36: #{tpu_custom_call.1} parent=23 // pred_fallthru
        _
      // Predicated region
      $region37: #{tpu_custom_call.1} parent=23 // pred_check
        %p324 = pneg %p132
      $region38: #{tpu_custom_call.1} parent=23 // pred_check_branch
        %326 = sbr.rel (%p324) target = $region40
      $region39: #{tpu_custom_call.1} parent=23 // pred_region
        %s327 = smul.u32 8, %s22
        %p328 = scmp.lt.s32.totalorder %s21, 1
        %s329 = scalar_select %p328, %s21, 1
        %p330 = scmp.lt.s32.totalorder %s327, 7
        %s331 = scalar_select %p330, %s327, 7
        %s332 = smul.addr %s329, 8
        %s333 = sadd.s32 %s331, %s332
        %s334 = smul.addr %s333, 4
        %s335 = scalar_lea.vmem %s3, %s334
        %s336 = smul.u32 8, %s22
      $region40: #{tpu_custom_call.1} parent=23 // pred_fallthru
        _
      // Predicated region
      $region41: #{tpu_custom_call.1} parent=23 // pred_check
        %p337 = pneg %p158
      $region42: #{tpu_custom_call.1} parent=23 // pred_check_branch
        %339 = sbr.rel (%p337) target = $region44
      $region43: #{tpu_custom_call.1} parent=23 // pred_region
        %p340 = scmp.lt.s32.totalorder %s21, 1
        %s341 = scalar_select %p340, %s21, 1
        %s342 = scalar_lea.vmem %s4, %s341
      $region44: #{tpu_custom_call.1} parent=23 // pred_fallthru
        _
      // Predicated region
      $region45: #{tpu_custom_call.1} parent=23 // pred_check
        %p343 = pneg %p184
      $region46: #{tpu_custom_call.1} parent=23 // pred_check_branch
        %345 = sbr.rel (%p343) target = $region48
      $region47: #{tpu_custom_call.1} parent=23 // pred_region
        %p346 = scmp.lt.s32.totalorder %s21, 1
        %s347 = scalar_select %p346, %s21, 1
        %s348 = scalar_lea.vmem %s5, %s347
      $region48: #{tpu_custom_call.1} parent=23 // pred_fallthru
        _
    $region24: #{tpu_custom_call.1} parent=5 // pred_fallthru
      _
    %p349 = scmp.le.s32.totalorder 1, %s14
    %p350 = scmp.lt.s32.totalorder %s14, 3
    %p351 = pnand %p349, %p350
    %p352 = pneg %p351
    // Predicated region
    $region49: #{tpu_custom_call.1} parent=5 // pred_check
      _
    $region50: #{tpu_custom_call.1} parent=5 // pred_check_branch
      %354 = sbr.rel (%p351) target = $region52
    $region51: #{tpu_custom_call.1} parent=5 // pred_region
      %s355 = ssub.s32 %s14, 1
      %s356 = smul.u32 8, %s24
      %p357 = scmp.lt.s32.totalorder %s23, 1
      %s358 = scalar_select %p357, %s23, 1
      %p359 = scmp.lt.s32.totalorder %s356, 7
      %s360 = scalar_select %p359, %s356, 7
      %s361 = smul.addr %s358, 8
      %s362 = sadd.s32 %s360, %s361
      %s363 = smul.addr %s362, 4
      %s364 = scalar_lea.vmem %s0, %s363
      %p365 = pneg %p54
      %p366 = pneg %p51
      %s367 = smul.u32 8, %s24
      %p368 = scmp.lt.s32.totalorder %s23, 1
      %s369 = scalar_select %p368, %s23, 1
      %p370 = scmp.lt.s32.totalorder %s367, 7
      %s371 = scalar_select %p370, %s367, 7
      %s372 = smul.addr %s369, 8
      %s373 = sadd.s32 %s371, %s372
      %s374 = smul.addr %s373, 4
      %s375 = scalar_lea.vmem %s1, %s374
      %p376 = pneg %p82
      %p377 = pneg %p79
      %s378 = smul.u32 8, %s24
      %p379 = scmp.lt.s32.totalorder %s23, 1
      %s380 = scalar_select %p379, %s23, 1
      %p381 = scmp.lt.s32.totalorder %s378, 7
      %s382 = scalar_select %p381, %s378, 7
      %s383 = smul.addr %s380, 8
      %s384 = sadd.s32 %s382, %s383
      %s385 = smul.addr %s384, 4
      %s386 = scalar_lea.vmem %s2, %s385
      %p387 = pneg %p110
      %p388 = pneg %p107
      %s389 = smul.u32 8, %s24
      %p390 = scmp.lt.s32.totalorder %s23, 1
      %s391 = scalar_select %p390, %s23, 1
      %p392 = scmp.lt.s32.totalorder %s389, 7
      %s393 = scalar_select %p392, %s389, 7
      %s394 = smul.addr %s391, 8
      %s395 = sadd.s32 %s393, %s394
      %s396 = smul.addr %s395, 4
      %s397 = scalar_lea.vmem %s3, %s396
      %p398 = pneg %p138
      %p399 = pneg %p135
      %p400 = scmp.lt.s32.totalorder %s23, 1
      %s401 = scalar_select %p400, %s23, 1
      %s402 = scalar_lea.vmem %s4, %s401
      %p403 = pneg %p164
      %p404 = pneg %p161
      %p405 = scmp.lt.s32.totalorder %s23, 1
      %s406 = scalar_select %p405, %s23, 1
      %s407 = scalar_lea.vmem %s5, %s406
      %p408 = pneg %p190
      %p409 = pneg %p187
      %p410 = pneg %p211
      %p411 = pneg %p208
      %p412 = pneg %p232
      %p413 = pneg %p229
      %p414 = pneg %p260
      %p415 = pneg %p257
      %s416 = smul.u32 8, %s24
      %p417 = scmp.lt.s32.totalorder %s23, 1
      %s418 = scalar_select %p417, %s23, 1
      %p419 = scmp.lt.s32.totalorder %s416, 7
      %s420 = scalar_select %p419, %s416, 7
      %s421 = smul.addr %s418, 8
      %s422 = sadd.s32 %s420, %s421
      %s423 = smul.addr %s422, 8
      %s424 = scalar_lea.vmem %s8, %s423
      %s425 = smul.u32 8, %s24
      %p426 = scmp.lt.s32.totalorder %s23, 1
      %s427 = scalar_select %p426, %s23, 1
      %p428 = scmp.lt.s32.totalorder %s425, 7
      %s429 = scalar_select %p428, %s425, 7
      %s430 = smul.addr %s427, 8
      %s431 = sadd.s32 %s429, %s430
      %s432 = smul.addr %s431, 4
      %s433 = scalar_lea.vmem %s0, %s432
      %s434 = smul.u32 8, %s24
      %s435 = smul.u32 8, %s24
      %p436 = scmp.lt.s32.totalorder %s23, 1
      %s437 = scalar_select %p436, %s23, 1
      %p438 = scmp.lt.s32.totalorder %s435, 7
      %s439 = scalar_select %p438, %s435, 7
      %s440 = smul.addr %s437, 8
      %s441 = sadd.s32 %s439, %s440
      %s442 = smul.addr %s441, 4
      %s443 = scalar_lea.vmem %s1, %s442
      %s444 = smul.u32 8, %s24
      %s445 = smul.u32 8, %s24
      %p446 = scmp.lt.s32.totalorder %s23, 1
      %s447 = scalar_select %p446, %s23, 1
      %p448 = scmp.lt.s32.totalorder %s445, 7
      %s449 = scalar_select %p448, %s445, 7
      %s450 = smul.addr %s447, 8
      %s451 = sadd.s32 %s449, %s450
      %s452 = smul.addr %s451, 4
      %s453 = scalar_lea.vmem %s2, %s452
      %s454 = smul.u32 8, %s24
      %s455 = smul.u32 8, %s24
      %p456 = scmp.lt.s32.totalorder %s23, 1
      %s457 = scalar_select %p456, %s23, 1
      %p458 = scmp.lt.s32.totalorder %s455, 7
      %s459 = scalar_select %p458, %s455, 7
      %s460 = smul.addr %s457, 8
      %s461 = sadd.s32 %s459, %s460
      %s462 = smul.addr %s461, 4
      %s463 = scalar_lea.vmem %s3, %s462
      %s464 = smul.u32 8, %s24
      %p465 = scmp.lt.s32.totalorder %s23, 1
      %s466 = scalar_select %p465, %s23, 1
      %s467 = scalar_lea.vmem %s4, %s466
      %p468 = scmp.lt.s32.totalorder %s23, 1
      %s469 = scalar_select %p468, %s23, 1
      %s470 = scalar_lea.vmem %s5, %s469
      %s471 = smul.u32 8, %s24
      %p472 = scmp.lt.s32.totalorder %s23, 1
      %s473 = scalar_select %p472, %s23, 1
      %p474 = scmp.lt.s32.totalorder %s471, 7
      %s475 = scalar_select %p474, %s471, 7
      %s476 = smul.addr %s473, 8
      %s477 = sadd.s32 %s475, %s476
      %s478 = smul.addr %s477, 8
      %s479 = scalar_lea.vmem %s8, %s478
      %s480 = smul.u32 8, %s24
      %v482 = vld [vmem:[%s467] sm:$0x1]
      %v483 = vld [vmem:[%s470] sm:$0x1]
      %v484 = vld [vmem:[%s433] sm:$0xf]
      %v485 = vld [vmem:[%s433 + $0x4] sm:$0xf]
      %v486 = vld [vmem:[%s433 + $0x8] sm:$0xf]
      %v487 = vld [vmem:[%s433 + $0xc] sm:$0xf]
      %v488 = vld [vmem:[%s433 + $0x10] sm:$0xf]
      %v489 = vld [vmem:[%s433 + $0x14] sm:$0xf]
      %v490 = vld [vmem:[%s433 + $0x18] sm:$0xf]
      %v491 = vld [vmem:[%s433 + $0x1c] sm:$0xf]
      %v492 = vunpack.c.l.bf16 %v484
      %v493 = vunpack.c.l.bf16 %v485
      %v494 = vunpack.c.l.bf16 %v486
      %v495 = vunpack.c.l.bf16 %v487
      %v496 = vunpack.c.l.bf16 %v488
      %v497 = vunpack.c.l.bf16 %v489
      %v498 = vunpack.c.l.bf16 %v490
      %v499 = vunpack.c.l.bf16 %v491
      %v500 = vld [vmem:[%s443] sm:$0xf]
      %v501 = vld [vmem:[%s443 + $0x4] sm:$0xf]
      %v502 = vld [vmem:[%s443 + $0x8] sm:$0xf]
      %v503 = vld [vmem:[%s443 + $0xc] sm:$0xf]
      %v504 = vld [vmem:[%s443 + $0x10] sm:$0xf]
      %v505 = vld [vmem:[%s443 + $0x14] sm:$0xf]
      %v506 = vld [vmem:[%s443 + $0x18] sm:$0xf]
      %v507 = vld [vmem:[%s443 + $0x1c] sm:$0xf]
      %v508 = vunpack.c.l.bf16 %v500
      %v509 = vunpack.c.l.bf16 %v501
      %v510 = vunpack.c.l.bf16 %v502
      %v511 = vunpack.c.l.bf16 %v503
      %v512 = vunpack.c.l.bf16 %v504
      %v513 = vunpack.c.l.bf16 %v505
      %v514 = vunpack.c.l.bf16 %v506
      %v515 = vunpack.c.l.bf16 %v507
      %v516 = vld [vmem:[%s453] sm:$0xf]
      %v517 = vld [vmem:[%s453 + $0x4] sm:$0xf]
      %v518 = vld [vmem:[%s453 + $0x8] sm:$0xf]
      %v519 = vld [vmem:[%s453 + $0xc] sm:$0xf]
      %v520 = vld [vmem:[%s453 + $0x10] sm:$0xf]
      %v521 = vld [vmem:[%s453 + $0x14] sm:$0xf]
      %v522 = vld [vmem:[%s453 + $0x18] sm:$0xf]
      %v523 = vld [vmem:[%s453 + $0x1c] sm:$0xf]
      %v524 = vunpack.c.l.bf16 %v516
      %v525 = vunpack.c.l.bf16 %v517
      %v526 = vunpack.c.l.bf16 %v518
      %v527 = vunpack.c.l.bf16 %v519
      %v528 = vunpack.c.l.bf16 %v520
      %v529 = vunpack.c.l.bf16 %v521
      %v530 = vunpack.c.l.bf16 %v522
      %v531 = vunpack.c.l.bf16 %v523
      %v532 = vld [vmem:[%s463] sm:$0xf]
      %v533 = vld [vmem:[%s463 + $0x4] sm:$0xf]
      %v534 = vld [vmem:[%s463 + $0x8] sm:$0xf]
      %v535 = vld [vmem:[%s463 + $0xc] sm:$0xf]
      %v536 = vld [vmem:[%s463 + $0x10] sm:$0xf]
      %v537 = vld [vmem:[%s463 + $0x14] sm:$0xf]
      %v538 = vld [vmem:[%s463 + $0x18] sm:$0xf]
      %v539 = vld [vmem:[%s463 + $0x1c] sm:$0xf]
      %v540 = vunpack.c.l.bf16 %v532
      %v541 = vunpack.c.l.bf16 %v533
      %v542 = vunpack.c.l.bf16 %v534
      %v543 = vunpack.c.l.bf16 %v535
      %v544 = vunpack.c.l.bf16 %v536
      %v545 = vunpack.c.l.bf16 %v537
      %v546 = vunpack.c.l.bf16 %v538
      %v547 = vunpack.c.l.bf16 %v539
      %v548 = vadd.f32 %v492, %v508
      %v549 = vadd.f32 %v493, %v509
      %v550 = vadd.f32 %v494, %v510
      %v551 = vadd.f32 %v495, %v511
      %v552 = vadd.f32 %v496, %v512
      %v553 = vadd.f32 %v497, %v513
      %v554 = vadd.f32 %v498, %v514
      %v555 = vadd.f32 %v499, %v515
      %v556 = vadd.f32 %v548, %v524
      %v557 = vadd.f32 %v549, %v525
      %v558 = vadd.f32 %v550, %v526
      %v559 = vadd.f32 %v551, %v527
      %v560 = vadd.f32 %v552, %v528
      %v561 = vadd.f32 %v553, %v529
      %v562 = vadd.f32 %v554, %v530
      %v563 = vadd.f32 %v555, %v531
      %v564 = vadd.f32 %v556, %v540
      %v565 = vadd.f32 %v557, %v541
      %v566 = vadd.f32 %v558, %v542
      %v567 = vadd.f32 %v559, %v543
      %v568 = vadd.f32 %v560, %v544
      %v569 = vadd.f32 %v561, %v545
      %v570 = vadd.f32 %v562, %v546
      %v571 = vadd.f32 %v563, %v547
      %v573 = vlaneseq
      %v574 = vshrl.u32 %v573, 7
      %v575 = vsub.s32 0, %v574
      %v576 = vrot.slane %v483, %v575
      %v578 = vmul.f32 %v564, %v576
      %v579 = vmul.f32 %v565, %v576
      %v580 = vmul.f32 %v566, %v576
      %v581 = vmul.f32 %v567, %v576
      %v582 = vmul.f32 %v568, %v576
      %v583 = vmul.f32 %v569, %v576
      %v584 = vmul.f32 %v570, %v576
      %v585 = vmul.f32 %v571, %v576
      %v587 = vlaneseq
      %v588 = vshrl.u32 %v587, 7
      %v589 = vsub.s32 0, %v588
      %v590 = vrot.slane %v482, %v589
      %v592 = vmul.f32 %v492, %v590
      %v593 = vmul.f32 %v493, %v590
      %v594 = vmul.f32 %v494, %v590
      %v595 = vmul.f32 %v495, %v590
      %v596 = vmul.f32 %v496, %v590
      %v597 = vmul.f32 %v497, %v590
      %v598 = vmul.f32 %v498, %v590
      %v599 = vmul.f32 %v499, %v590
      %v600 = vadd.f32 %v492, %v578
      %v601 = vadd.f32 %v493, %v579
      %v602 = vadd.f32 %v494, %v580
      %v603 = vadd.f32 %v495, %v581
      %v604 = vadd.f32 %v496, %v582
      %v605 = vadd.f32 %v497, %v583
      %v606 = vadd.f32 %v498, %v584
      %v607 = vadd.f32 %v499, %v585
      %v608 = vmul.f32 %v592, %v600
      %v609 = vmul.f32 %v593, %v601
      %v610 = vmul.f32 %v594, %v602
      %v611 = vmul.f32 %v595, %v603
      %v612 = vmul.f32 %v596, %v604
      %v613 = vmul.f32 %v597, %v605
      %v614 = vmul.f32 %v598, %v606
      %v615 = vmul.f32 %v599, %v607
      %616 = vrot.lane.b32.xlu0 %v590, 120
      %v617 = vpop.permute.xlu0 %616
      %v619 = vmul.f32 %v508, %v617
      %v620 = vmul.f32 %v509, %v617
      %v621 = vmul.f32 %v510, %v617
      %v622 = vmul.f32 %v511, %v617
      %v623 = vmul.f32 %v512, %v617
      %v624 = vmul.f32 %v513, %v617
      %v625 = vmul.f32 %v514, %v617
      %v626 = vmul.f32 %v515, %v617
      %v627 = vadd.f32 %v508, %v578
      %v628 = vadd.f32 %v509, %v579
      %v629 = vadd.f32 %v510, %v580
      %v630 = vadd.f32 %v511, %v581
      %v631 = vadd.f32 %v512, %v582
      %v632 = vadd.f32 %v513, %v583
      %v633 = vadd.f32 %v514, %v584
      %v634 = vadd.f32 %v515, %v585
      %v635 = vmul.f32 %v619, %v627
      %v636 = vmul.f32 %v620, %v628
      %v637 = vmul.f32 %v621, %v629
      %v638 = vmul.f32 %v622, %v630
      %v639 = vmul.f32 %v623, %v631
      %v640 = vmul.f32 %v624, %v632
      %v641 = vmul.f32 %v625, %v633
      %v642 = vmul.f32 %v626, %v634
      %643 = vrot.lane.b32.xlu0 %v590, 112
      %v644 = vpop.permute.xlu0 %643
      %v646 = vmul.f32 %v524, %v644
      %v647 = vmul.f32 %v525, %v644
      %v648 = vmul.f32 %v526, %v644
      %v649 = vmul.f32 %v527, %v644
      %v650 = vmul.f32 %v528, %v644
      %v651 = vmul.f32 %v529, %v644
      %v652 = vmul.f32 %v530, %v644
      %v653 = vmul.f32 %v531, %v644
      %v654 = vadd.f32 %v524, %v578
      %v655 = vadd.f32 %v525, %v579
      %v656 = vadd.f32 %v526, %v580
      %v657 = vadd.f32 %v527, %v581
      %v658 = vadd.f32 %v528, %v582
      %v659 = vadd.f32 %v529, %v583
      %v660 = vadd.f32 %v530, %v584
      %v661 = vadd.f32 %v531, %v585
      %v662 = vmul.f32 %v646, %v654
      %v663 = vmul.f32 %v647, %v655
      %v664 = vmul.f32 %v648, %v656
      %v665 = vmul.f32 %v649, %v657
      %v666 = vmul.f32 %v650, %v658
      %v667 = vmul.f32 %v651, %v659
      %v668 = vmul.f32 %v652, %v660
      %v669 = vmul.f32 %v653, %v661
      %670 = vrot.lane.b32.xlu0 %v590, 104
      %v671 = vpop.permute.xlu0 %670
      %v673 = vmul.f32 %v540, %v671
      %v674 = vmul.f32 %v541, %v671
      %v675 = vmul.f32 %v542, %v671
      %v676 = vmul.f32 %v543, %v671
      %v677 = vmul.f32 %v544, %v671
      %v678 = vmul.f32 %v545, %v671
      %v679 = vmul.f32 %v546, %v671
      %v680 = vmul.f32 %v547, %v671
      %v681 = vadd.f32 %v540, %v578
      %v682 = vadd.f32 %v541, %v579
      %v683 = vadd.f32 %v542, %v580
      %v684 = vadd.f32 %v543, %v581
      %v685 = vadd.f32 %v544, %v582
      %v686 = vadd.f32 %v545, %v583
      %v687 = vadd.f32 %v546, %v584
      %v688 = vadd.f32 %v547, %v585
      %v689 = vmul.f32 %v673, %v681
      %v690 = vmul.f32 %v674, %v682
      %v691 = vmul.f32 %v675, %v683
      %v692 = vmul.f32 %v676, %v684
      %v693 = vmul.f32 %v677, %v685
      %v694 = vmul.f32 %v678, %v686
      %v695 = vmul.f32 %v679, %v687
      %v696 = vmul.f32 %v680, %v688
      %705 = vrot.lane.b32.xlu0 %v635, 8
      %v706 = vpop.permute.xlu0 %705
      %707 = vrot.lane.b32.xlu0 %v636, 8
      %v708 = vpop.permute.xlu0 %707
      %709 = vrot.lane.b32.xlu0 %v637, 8
      %v710 = vpop.permute.xlu0 %709
      %711 = vrot.lane.b32.xlu0 %v638, 8
      %v712 = vpop.permute.xlu0 %711
      %713 = vrot.lane.b32.xlu0 %v639, 8
      %v714 = vpop.permute.xlu0 %713
      %715 = vrot.lane.b32.xlu0 %v640, 8
      %v716 = vpop.permute.xlu0 %715
      %717 = vrot.lane.b32.xlu0 %v641, 8
      %v718 = vpop.permute.xlu0 %717
      %719 = vrot.lane.b32.xlu0 %v642, 8
      %v720 = vpop.permute.xlu0 %719
      %737 = vrot.lane.b32.xlu0 %v662, 16
      %v738 = vpop.permute.xlu0 %737
      %739 = vrot.lane.b32.xlu0 %v663, 16
      %v740 = vpop.permute.xlu0 %739
      %741 = vrot.lane.b32.xlu0 %v664, 16
      %v742 = vpop.permute.xlu0 %741
      %743 = vrot.lane.b32.xlu0 %v665, 16
      %v744 = vpop.permute.xlu0 %743
      %745 = vrot.lane.b32.xlu0 %v666, 16
      %v746 = vpop.permute.xlu0 %745
      %747 = vrot.lane.b32.xlu0 %v667, 16
      %v748 = vpop.permute.xlu0 %747
      %749 = vrot.lane.b32.xlu0 %v668, 16
      %v750 = vpop.permute.xlu0 %749
      %751 = vrot.lane.b32.xlu0 %v669, 16
      %v752 = vpop.permute.xlu0 %751
      %769 = vrot.lane.b32.xlu0 %v689, 24
      %v770 = vpop.permute.xlu0 %769
      %771 = vrot.lane.b32.xlu0 %v690, 24
      %v772 = vpop.permute.xlu0 %771
      %773 = vrot.lane.b32.xlu0 %v691, 24
      %v774 = vpop.permute.xlu0 %773
      %775 = vrot.lane.b32.xlu0 %v692, 24
      %v776 = vpop.permute.xlu0 %775
      %777 = vrot.lane.b32.xlu0 %v693, 24
      %v778 = vpop.permute.xlu0 %777
      %779 = vrot.lane.b32.xlu0 %v694, 24
      %v780 = vpop.permute.xlu0 %779
      %781 = vrot.lane.b32.xlu0 %v695, 24
      %v782 = vpop.permute.xlu0 %781
      %783 = vrot.lane.b32.xlu0 %v696, 24
      %v784 = vpop.permute.xlu0 %783
      %vm793 = vcmask 64512
      %v794 = vsel %vm793, %v608, %v706
      %v795 = vsel %vm793, %v609, %v708
      %v796 = vsel %vm793, %v610, %v710
      %v797 = vsel %vm793, %v611, %v712
      %v798 = vsel %vm793, %v612, %v714
      %v799 = vsel %vm793, %v613, %v716
      %v800 = vsel %vm793, %v614, %v718
      %v801 = vsel %vm793, %v615, %v720
      %vm802 = vcmask 130048
      %v803 = vsel %vm802, %v794, %v738
      %v804 = vsel %vm802, %v795, %v740
      %v805 = vsel %vm802, %v796, %v742
      %v806 = vsel %vm802, %v797, %v744
      %v807 = vsel %vm802, %v798, %v746
      %v808 = vsel %vm802, %v799, %v748
      %v809 = vsel %vm802, %v800, %v750
      %v810 = vsel %vm802, %v801, %v752
      %vm811 = vcmask 195584
      %v812 = vsel %vm811, %v803, %v770
      %v813 = vsel %vm811, %v804, %v772
      %v814 = vsel %vm811, %v805, %v774
      %v815 = vsel %vm811, %v806, %v776
      %v816 = vsel %vm811, %v807, %v778
      %v817 = vsel %vm811, %v808, %v780
      %v818 = vsel %vm811, %v809, %v782
      %v819 = vsel %vm811, %v810, %v784
      %v820 = vpack.c.bf16 %v813, %v812
      %v821 = vpack.c.bf16 %v815, %v814
      %v822 = vpack.c.bf16 %v817, %v816
      %v823 = vpack.c.bf16 %v819, %v818
      %v824 = vld [vmem:[%s6] sm:$0xf]
      %v825 = vld [vmem:[%s6 + $0x4] sm:$0xf]
      %v826 = vld [vmem:[%s6 + $0x8] sm:$0xf]
      %v827 = vld [vmem:[%s6 + $0xc] sm:$0xf]
      %v828 = vld [vmem:[%s7] sm:$0x1]
      %v830 = vlaneseq
      %v831 = vshrl.u32 %v830, 7
      %v832 = vsub.s32 0, %v831
      %v833 = vrot.slane %v828, %v832
      %v839 = vunpack.c.l.b16 %v824
      %v840 = vunpack.c.l.b16 %v825
      %v841 = vunpack.c.l.b16 %v826
      %v842 = vunpack.c.l.b16 %v827
      %v843 = vpack.c.b16 %v840, %v839
      %v844 = vpack.c.b16 %v842, %v841
      %vm847 = vcmask 261120
      %v849 = vsel %vm847, %v820, 0
      %v852 = vsel %vm847, %v821, 0
      %v855 = vsel %vm847, %v822, 0
      %v858 = vsel %vm847, %v823, 0
      %860 = vmatprep.subr.bf16.mxu0 0
      %861 = vmatpush1.bf16.msra.mxu0 %v843
      %862 = vmatprep.subr.bf16.mxu0 0
      %863 = vmatpush1.bf16.msra.mxu0 %v844
      %864 = vmatprep.subr.bf16.mxu0 0
      %865 = vmatpush1.bf16.msra.mxu0 0
      %866 = vmatprep.subr.bf16.mxu0 0
      %867 = vmatpush1.bf16.msra.mxu0 0
      %868 = vmatprep.subr.bf16.mxu0 0
      %869 = vmatpush1.bf16.msra.mxu0 0
      %870 = vmatprep.subr.bf16.mxu0 0
      %871 = vmatpush1.bf16.msra.mxu0 0
      %872 = vmatprep.subr.bf16.mxu0 0
      %873 = vmatpush1.bf16.msra.mxu0 0
      %874 = vmatprep.subr.bf16.mxu0 0
      %875 = vmatpush1.bf16.msra.mxu0 0
      %876 = vmatprep.subr.bf16.mxu0 0
      %877 = vmatpush1.bf16.msra.mxu0 0
      %878 = vmatprep.subr.bf16.mxu0 0
      %879 = vmatpush1.bf16.msra.mxu0 0
      %880 = vmatprep.subr.bf16.mxu0 0
      %881 = vmatpush1.bf16.msra.mxu0 0
      %882 = vmatprep.subr.bf16.mxu0 0
      %883 = vmatpush1.bf16.msra.mxu0 0
      %884 = vmatprep.subr.bf16.mxu0 0
      %885 = vmatpush1.bf16.msra.mxu0 0
      %886 = vmatprep.subr.bf16.mxu0 0
      %887 = vmatpush1.bf16.msra.mxu0 0
      %888 = vmatprep.subr.bf16.mxu0 0
      %889 = vmatpush1.bf16.msra.mxu0 0
      %890 = vmatprep.subr.bf16.mxu0 0
      %891 = vmatpush1.bf16.msra.mxu0 0
      %892 = vmatprep.mubr.bf16.mxu0 0
      %893 = vmatmul.mubr.bf16.gmra.mrb[0].mxu0 %v849
      %v894 = vpop.f32.mrb[0].mxu0
      %v895 = vadd.f32 %v833, %v894
      %v896 = vpop.f32.mrb[0].mxu0
      %v897 = vpop.f32.mrb[0].mxu0
      %v898 = vadd.f32 %v833, %v897
      %v899 = vpop.f32.mrb[0].mxu0
      %900 = vmatprep.mubr.bf16.mxu0 0
      %901 = vmatmul.mubr.bf16.gmra.mrb[0].mxu0 %v852
      %v902 = vpop.f32.mrb[0].mxu0
      %v903 = vadd.f32 %v833, %v902
      %v904 = vpop.f32.mrb[0].mxu0
      %v905 = vpop.f32.mrb[0].mxu0
      %v906 = vadd.f32 %v833, %v905
      %v907 = vpop.f32.mrb[0].mxu0
      %908 = vmatprep.mubr.bf16.mxu0 0
      %909 = vmatmul.mubr.bf16.gmra.mrb[0].mxu0 %v855
      %v910 = vpop.f32.mrb[0].mxu0
      %v911 = vadd.f32 %v833, %v910
      %v912 = vpop.f32.mrb[0].mxu0
      %v913 = vpop.f32.mrb[0].mxu0
      %v914 = vadd.f32 %v833, %v913
      %v915 = vpop.f32.mrb[0].mxu0
      %916 = vmatprep.mubr.bf16.mxu0 0
      %917 = vmatmul.mubr.bf16.gmra.mrb[0].mxu0 %v858
      %v918 = vpop.f32.mrb[0].mxu0
      %v919 = vadd.f32 %v833, %v918
      %v920 = vpop.f32.mrb[0].mxu0
      %v921 = vpop.f32.mrb[0].mxu0
      %v922 = vadd.f32 %v833, %v921
      %v923 = vpop.f32.mrb[0].mxu0
      %924 = vdwg.mxu0
      %925 = vst.msk [vmem:[%s479] sm:$0xff] %vm802, %v895
      %926 = vst.msk [vmem:[%s479 + $0x8] sm:$0xff] %vm802, %v898
      %927 = vst.msk [vmem:[%s479 + $0x10] sm:$0xff] %vm802, %v903
      %928 = vst.msk [vmem:[%s479 + $0x18] sm:$0xff] %vm802, %v906
      %929 = vst.msk [vmem:[%s479 + $0x20] sm:$0xff] %vm802, %v911
      %930 = vst.msk [vmem:[%s479 + $0x28] sm:$0xff] %vm802, %v914
      %931 = vst.msk [vmem:[%s479 + $0x30] sm:$0xff] %vm802, %v919
      %932 = vst.msk [vmem:[%s479 + $0x38] sm:$0xff] %vm802, %v922
      %s933 = smul.u32 8, %s24
      %p934 = scmp.lt.s32.totalorder %s23, 1
      %s935 = scalar_select %p934, %s23, 1
      %p936 = scmp.lt.s32.totalorder %s933, 7
      %s937 = scalar_select %p936, %s933, 7
      %s938 = smul.addr %s935, 8
      %s939 = sadd.s32 %s937, %s938
      %s940 = smul.addr %s939, 8
      %s941 = scalar_lea.vmem %s8, %s940
      // Predicated region
      $region53: #{tpu_custom_call.1} parent=51 // pred_check
        %p942 = pneg %p257
      $region54: #{tpu_custom_call.1} parent=51 // pred_check_branch
        %944 = sbr.rel (%p942) target = $region56
      $region55: #{tpu_custom_call.1} parent=51 // pred_region
        %s945 = smul.u32 8, %s24
      $region56: #{tpu_custom_call.1} parent=51 // pred_fallthru
        _
    $region52: #{tpu_custom_call.1} parent=5 // pred_fallthru
      _
    %p946 = scmp.le.s32.totalorder 2, %s14
    // Predicated region
    $region57: #{tpu_custom_call.1} parent=5 // pred_check
      %p947 = pneg %p946
    $region58: #{tpu_custom_call.1} parent=5 // pred_check_branch
      %949 = sbr.rel (%p947) target = $region60
    $region59: #{tpu_custom_call.1} parent=5 // pred_region
      %s950 = ssub.s32 %s14, 2
      // Predicated region
      $region61: #{tpu_custom_call.1} parent=59 // pred_check
        %p951 = pneg %p263
      $region62: #{tpu_custom_call.1} parent=59 // pred_check_branch
        %953 = sbr.rel (%p951) target = $region64
      $region63: #{tpu_custom_call.1} parent=59 // pred_region
        %s954 = smul.u32 8, %s26
        %p955 = scmp.lt.s32.totalorder %s25, 1
        %s956 = scalar_select %p955, %s25, 1
        %p957 = scmp.lt.s32.totalorder %s954, 7
        %s958 = scalar_select %p957, %s954, 7
        %s959 = smul.addr %s956, 8
        %s960 = sadd.s32 %s958, %s959
        %s961 = smul.addr %s960, 8
        %s962 = scalar_lea.vmem %s8, %s961
      $region64: #{tpu_custom_call.1} parent=59 // pred_fallthru
        _
    $region60: #{tpu_custom_call.1} parent=5 // pred_fallthru
      _
  $region6: #{tpu_custom_call.1} parent=0 // loop_footer
    %s18 = sadd.s32 1, %s14
  $region7: #{tpu_custom_call.1} parent=0 // loop_footer_branch
    %13 = sbr.rel target = $region3
  $region8: #{tpu_custom_call.1} parent=0 // loop_exit
    _

// kernel: tpu_custom_call.1
$region0: #{tpu_custom_call.1}
  #allocation0 [shape = 'u32[]', space=smem, size = 0x4, offset = 0x4, fixed_abs, tag = 'smem constant byte address 0x4 - core index']
  #allocation1 [shape = 'u32[144,128]{1,0:T(1,128)}', space=vmem, size = 0x12000, scoped, tag = 'internal scratch']
  %s0 = inlined_call_operand.vmem [shape: bf16[2,64,8], index: 0, kind: input, shape index: {}]
  %s1 = inlined_call_operand.vmem [shape: bf16[2,64,8], index: 1, kind: input, shape index: {}]
  %s2 = inlined_call_operand.vmem [shape: bf16[2,64,8], index: 2, kind: input, shape index: {}]
  %s3 = inlined_call_operand.vmem [shape: bf16[2,64,8], index: 3, kind: input, shape index: {}]
  %s4 = inlined_call_operand.vmem [shape: f32[2,1,32], index: 4, kind: input, shape index: {}]
  %s5 = inlined_call_operand.vmem [shape: f32[2,1,8], index: 5, kind: input, shape index: {}]
  %s6 = inlined_call_operand.vmem [shape: bf16[32,16], index: 6, kind: input, shape index: {}]
  %s7 = inlined_call_operand.vmem [shape: f32[1,16], index: 7, kind: input, shape index: {}]
  %s8 = inlined_call_operand.vmem [shape: f32[2,64,16], index: 8, kind: output, shape index: {}]
  %s9 = sld [smem:[#allocation0]]
  $region65: #{tpu_custom_call.1} parent=0
    _
  %s11 = ssub.s32 1, %s9
  %s12 = scalar_select 0, %s11, %s9
  loop: start=0, step=1, limit=4
  $region2: #{tpu_custom_call.1} parent=0 // loop_pre_header
    _
  $region3: #{tpu_custom_call.1} parent=0 // loop_header
    %s14 = sphi 0, %s18
    %p15 = scmp.ge.s32.totalorder %s14, 4
    %s21 = sphi 0, %s33
    %s22 = sphi 0, %s29
    %s23 = sphi 0, %s21
    %s24 = sphi 0, %s22
    %s25 = sphi 0, %s23
    %s26 = sphi 0, %s24
    %s38 = sphi 0, %s40
    %s41 = sphi 0, %s38
    %s42 = sphi 0, %s41
    %s58 = sphi 0, %s42
    %s66 = sphi 0, %s68
    %s69 = sphi 0, %s66
    %s70 = sphi 0, %s69
    %s86 = sphi 0, %s70
    %s94 = sphi 0, %s96
    %s97 = sphi 0, %s94
    %s98 = sphi 0, %s97
    %s114 = sphi 0, %s98
    %s122 = sphi 0, %s124
    %s125 = sphi 0, %s122
    %s126 = sphi 0, %s125
    %s142 = sphi 0, %s126
    %s148 = sphi 0, %s150
    %s151 = sphi 0, %s148
    %s152 = sphi 0, %s151
    %s168 = sphi 0, %s152
    %s174 = sphi 0, %s176
    %s177 = sphi 0, %s174
    %s178 = sphi 0, %s177
    %s194 = sphi 0, %s178
    %s198 = sphi 0, %s198
    %s200 = sphi 0, %s198
    %s201 = sphi 0, %s200
    %s215 = sphi 0, %s201
    %s219 = sphi 0, %s219
    %s221 = sphi 0, %s219
    %s222 = sphi 0, %s221
    %s236 = sphi 0, %s222
    %s244 = sphi 0, %s246
    %s247 = sphi 0, %s244
    %s248 = sphi 0, %s247
    %s264 = sphi 0, %s248
  $region4: #{tpu_custom_call.1} parent=0 // loop_header_branch
    %17 = sbr.rel (%p15) target = $region8
  $region5: #{tpu_custom_call.1} parent=0 // loop_body
    %s19 = ssub.s32 %s14, 1
    %s20 = ssub.s32 %s14, 2
    %s27 = sadd.s32 1, %s22
    %p28 = scmp.ge.s32.totalorder %s27, 1
    %s29 = scalar_select %p28, 0, %s27
    %s30 = sadd.s32 1, %s21
    %s31 = scalar_select %p28, %s30, %s21
    %p32 = scmp.ge.s32.totalorder %s31, 2
    %s33 = scalar_select %p32, 0, %s31
    %s34 = ssub.s32 %s21, %s33
    %s35 = ssub.s32 %s22, %s29
    %s36 = sor.u32 %s34, %s35
    %p37 = scmp.eq.s32.totalorder %s36, 0
    %s39 = sadd.s32 %s38, 1
    %s40 = scalar_select %p37, %s38, %s39
    %p43 = pneg %p37
    %p44 = scmp.eq.s32.totalorder %s14, 1
    %p45 = por %p43, %p44
    %p46 = scmp.ne.s32.totalorder %s38, %s41
    %p47 = scmp.eq.s32.totalorder %s14, 0
    %p48 = por %p46, %p47
    %p49 = scmp.ne.s32.totalorder %s38, %s41
    %p50 = scmp.eq.s32.totalorder %s19, 1
    %p51 = por %p49, %p50
    %p52 = scmp.ne.s32.totalorder %s41, %s42
    %p53 = scmp.eq.s32.totalorder %s19, 0
    %p54 = por %p52, %p53
    %p55 = scmp.ne.s32.totalorder %s41, %s42
    %p56 = scmp.eq.s32.totalorder %s20, 1
    %p57 = por %p55, %p56
    %p59 = scmp.ne.s32.totalorder %s42, %s58
    %p60 = scmp.eq.s32.totalorder %s20, 0
    %p61 = por %p59, %p60
    %s62 = ssub.s32 %s21, %s33
    %s63 = ssub.s32 %s22, %s29
    %s64 = sor.u32 %s62, %s63
    %p65 = scmp.eq.s32.totalorder %s64, 0
    %s67 = sadd.s32 %s66, 1
    %s68 = scalar_select %p65, %s66, %s67
    %p71 = pneg %p65
    %p72 = scmp.eq.s32.totalorder %s14, 1
    %p73 = por %p71, %p72
    %p74 = scmp.ne.s32.totalorder %s66, %s69
    %p75 = scmp.eq.s32.totalorder %s14, 0
    %p76 = por %p74, %p75
    %p77 = scmp.ne.s32.totalorder %s66, %s69
    %p78 = scmp.eq.s32.totalorder %s19, 1
    %p79 = por %p77, %p78
    %p80 = scmp.ne.s32.totalorder %s69, %s70
    %p81 = scmp.eq.s32.totalorder %s19, 0
    %p82 = por %p80, %p81
    %p83 = scmp.ne.s32.totalorder %s69, %s70
    %p84 = scmp.eq.s32.totalorder %s20, 1
    %p85 = por %p83, %p84
    %p87 = scmp.ne.s32.totalorder %s70, %s86
    %p88 = scmp.eq.s32.totalorder %s20, 0
    %p89 = por %p87, %p88
    %s90 = ssub.s32 %s21, %s33
    %s91 = ssub.s32 %s22, %s29
    %s92 = sor.u32 %s90, %s91
    %p93 = scmp.eq.s32.totalorder %s92, 0
    %s95 = sadd.s32 %s94, 1
    %s96 = scalar_select %p93, %s94, %s95
    %p99 = pneg %p93
    %p100 = scmp.eq.s32.totalorder %s14, 1
    %p101 = por %p99, %p100
    %p102 = scmp.ne.s32.totalorder %s94, %s97
    %p103 = scmp.eq.s32.totalorder %s14, 0
    %p104 = por %p102, %p103
    %p105 = scmp.ne.s32.totalorder %s94, %s97
    %p106 = scmp.eq.s32.totalorder %s19, 1
    %p107 = por %p105, %p106
    %p108 = scmp.ne.s32.totalorder %s97, %s98
    %p109 = scmp.eq.s32.totalorder %s19, 0
    %p110 = por %p108, %p109
    %p111 = scmp.ne.s32.totalorder %s97, %s98
    %p112 = scmp.eq.s32.totalorder %s20, 1
    %p113 = por %p111, %p112
    %p115 = scmp.ne.s32.totalorder %s98, %s114
    %p116 = scmp.eq.s32.totalorder %s20, 0
    %p117 = por %p115, %p116
    %s118 = ssub.s32 %s21, %s33
    %s119 = ssub.s32 %s22, %s29
    %s120 = sor.u32 %s118, %s119
    %p121 = scmp.eq.s32.totalorder %s120, 0
    %s123 = sadd.s32 %s122, 1
    %s124 = scalar_select %p121, %s122, %s123
    %p127 = pneg %p121
    %p128 = scmp.eq.s32.totalorder %s14, 1
    %p129 = por %p127, %p128
    %p130 = scmp.ne.s32.totalorder %s122, %s125
    %p131 = scmp.eq.s32.totalorder %s14, 0
    %p132 = por %p130, %p131
    %p133 = scmp.ne.s32.totalorder %s122, %s125
    %p134 = scmp.eq.s32.totalorder %s19, 1
    %p135 = por %p133, %p134
    %p136 = scmp.ne.s32.totalorder %s125, %s126
    %p137 = scmp.eq.s32.totalorder %s19, 0
    %p138 = por %p136, %p137
    %p139 = scmp.ne.s32.totalorder %s125, %s126
    %p140 = scmp.eq.s32.totalorder %s20, 1
    %p141 = por %p139, %p140
    %p143 = scmp.ne.s32.totalorder %s126, %s142
    %p144 = scmp.eq.s32.totalorder %s20, 0
    %p145 = por %p143, %p144
    %s146 = ssub.s32 %s21, %s33
    %p147 = scmp.eq.s32.totalorder %s146, 0
    %s149 = sadd.s32 %s148, 1
    %s150 = scalar_select %p147, %s148, %s149
    %p153 = pneg %p147
    %p154 = scmp.eq.s32.totalorder %s14, 1
    %p155 = por %p153, %p154
    %p156 = scmp.ne.s32.totalorder %s148, %s151
    %p157 = scmp.eq.s32.totalorder %s14, 0
    %p158 = por %p156, %p157
    %p159 = scmp.ne.s32.totalorder %s148, %s151
    %p160 = scmp.eq.s32.totalorder %s19, 1
    %p161 = por %p159, %p160
    %p162 = scmp.ne.s32.totalorder %s151, %s152
    %p163 = scmp.eq.s32.totalorder %s19, 0
    %p164 = por %p162, %p163
    %p165 = scmp.ne.s32.totalorder %s151, %s152
    %p166 = scmp.eq.s32.totalorder %s20, 1
    %p167 = por %p165, %p166
    %p169 = scmp.ne.s32.totalorder %s152, %s168
    %p170 = scmp.eq.s32.totalorder %s20, 0
    %p171 = por %p169, %p170
    %s172 = ssub.s32 %s21, %s33
    %p173 = scmp.eq.s32.totalorder %s172, 0
    %s175 = sadd.s32 %s174, 1
    %s176 = scalar_select %p173, %s174, %s175
    %p179 = pneg %p173
    %p180 = scmp.eq.s32.totalorder %s14, 1
    %p181 = por %p179, %p180
    %p182 = scmp.ne.s32.totalorder %s174, %s177
    %p183 = scmp.eq.s32.totalorder %s14, 0
    %p184 = por %p182, %p183
    %p185 = scmp.ne.s32.totalorder %s174, %s177
    %p186 = scmp.eq.s32.totalorder %s19, 1
    %p187 = por %p185, %p186
    %p188 = scmp.ne.s32.totalorder %s177, %s178
    %p189 = scmp.eq.s32.totalorder %s19, 0
    %p190 = por %p188, %p189
    %p191 = scmp.ne.s32.totalorder %s177, %s178
    %p192 = scmp.eq.s32.totalorder %s20, 1
    %p193 = por %p191, %p192
    %p195 = scmp.ne.s32.totalorder %s178, %s194
    %p196 = scmp.eq.s32.totalorder %s20, 0
    %p197 = por %p195, %p196
    %s199 = sadd.s32 %s198, 1
    %p202 = scmp.eq.s32.totalorder %s14, 1
    %p203 = scmp.ne.s32.totalorder %s198, %s200
    %p204 = scmp.eq.s32.totalorder %s14, 0
    %p205 = por %p203, %p204
    %p206 = scmp.ne.s32.totalorder %s198, %s200
    %p207 = scmp.eq.s32.totalorder %s19, 1
    %p208 = por %p206, %p207
    %p209 = scmp.ne.s32.totalorder %s200, %s201
    %p210 = scmp.eq.s32.totalorder %s19, 0
    %p211 = por %p209, %p210
    %p212 = scmp.ne.s32.totalorder %s200, %s201
    %p213 = scmp.eq.s32.totalorder %s20, 1
    %p214 = por %p212, %p213
    %p216 = scmp.ne.s32.totalorder %s201, %s215
    %p217 = scmp.eq.s32.totalorder %s20, 0
    %p218 = por %p216, %p217
    %s220 = sadd.s32 %s219, 1
    %p223 = scmp.eq.s32.totalorder %s14, 1
    %p224 = scmp.ne.s32.totalorder %s219, %s221
    %p225 = scmp.eq.s32.totalorder %s14, 0
    %p226 = por %p224, %p225
    %p227 = scmp.ne.s32.totalorder %s219, %s221
    %p228 = scmp.eq.s32.totalorder %s19, 1
    %p229 = por %p227, %p228
    %p230 = scmp.ne.s32.totalorder %s221, %s222
    %p231 = scmp.eq.s32.totalorder %s19, 0
    %p232 = por %p230, %p231
    %p233 = scmp.ne.s32.totalorder %s221, %s222
    %p234 = scmp.eq.s32.totalorder %s20, 1
    %p235 = por %p233, %p234
    %p237 = scmp.ne.s32.totalorder %s222, %s236
    %p238 = scmp.eq.s32.totalorder %s20, 0
    %p239 = por %p237, %p238
    %s240 = ssub.s32 %s21, %s33
    %s241 = ssub.s32 %s22, %s29
    %s242 = sor.u32 %s240, %s241
    %p243 = scmp.eq.s32.totalorder %s242, 0
    %s245 = sadd.s32 %s244, 1
    %s246 = scalar_select %p243, %s244, %s245
    %p249 = pneg %p243
    %p250 = scmp.eq.s32.totalorder %s14, 1
    %p251 = por %p249, %p250
    %p252 = scmp.ne.s32.totalorder %s244, %s247
    %p253 = scmp.eq.s32.totalorder %s14, 0
    %p254 = por %p252, %p253
    %p255 = scmp.ne.s32.totalorder %s244, %s247
    %p256 = scmp.eq.s32.totalorder %s19, 1
    %p257 = por %p255, %p256
    %p258 = scmp.ne.s32.totalorder %s247, %s248
    %p259 = scmp.eq.s32.totalorder %s19, 0
    %p260 = por %p258, %p259
    %p261 = scmp.ne.s32.totalorder %s247, %s248
    %p262 = scmp.eq.s32.totalorder %s20, 1
    %p263 = por %p261, %p262
    %p265 = scmp.ne.s32.totalorder %s248, %s264
    %p266 = scmp.eq.s32.totalorder %s20, 0
    %p267 = por %p265, %p266
    %p268 = scmp.le.s32.totalorder 1, %s14
    %p269 = scmp.lt.s32.totalorder %s14, 3
    %p270 = pnand %p268, %p269
    %p271 = pneg %p270
    // Predicated region
    $region9: #{tpu_custom_call.1} parent=5 // pred_check
      _
    $region10: #{tpu_custom_call.1} parent=5 // pred_check_branch
      %273 = sbr.rel (%p270) target = $region12
    $region11: #{tpu_custom_call.1} parent=5 // pred_region
      %s274 = ssub.s32 %s14, 1
      // Predicated region
      $region13: #{tpu_custom_call.1} parent=11 // pred_check
        %p275 = pneg %p211
      $region14: #{tpu_custom_call.1} parent=11 // pred_check_branch
        %277 = sbr.rel (%p275) target = $region16
      $region15: #{tpu_custom_call.1} parent=11 // pred_region
        _
      $region16: #{tpu_custom_call.1} parent=11 // pred_fallthru
        _
      // Predicated region
      $region17: #{tpu_custom_call.1} parent=11 // pred_check
        %p278 = pneg %p232
      $region18: #{tpu_custom_call.1} parent=11 // pred_check_branch
        %280 = sbr.rel (%p278) target = $region20
      $region19: #{tpu_custom_call.1} parent=11 // pred_region
        _
      $region20: #{tpu_custom_call.1} parent=11 // pred_fallthru
        _
    $region12: #{tpu_custom_call.1} parent=5 // pred_fallthru
      _
    %p281 = scmp.lt.s32.totalorder %s14, 2
    // Predicated region
    $region21: #{tpu_custom_call.1} parent=5 // pred_check
      %p282 = pneg %p281
    $region22: #{tpu_custom_call.1} parent=5 // pred_check_branch
      %284 = sbr.rel (%p282) target = $region24
    $region23: #{tpu_custom_call.1} parent=5 // pred_region
      // Predicated region
      $region25: #{tpu_custom_call.1} parent=23 // pred_check
        %p285 = pneg %p48
      $region26: #{tpu_custom_call.1} parent=23 // pred_check_branch
        %287 = sbr.rel (%p285) target = $region28
      $region27: #{tpu_custom_call.1} parent=23 // pred_region
        %s288 = smul.u32 8, %s22
        %p289 = scmp.lt.s32.totalorder %s21, 1
        %s290 = scalar_select %p289, %s21, 1
        %p291 = scmp.lt.s32.totalorder %s288, 7
        %s292 = scalar_select %p291, %s288, 7
        %s293 = smul.addr %s290, 8
        %s294 = sadd.s32 %s292, %s293
        %s295 = smul.addr %s294, 4
        %s296 = scalar_lea.vmem %s0, %s295
        %s297 = smul.u32 8, %s22
      $region28: #{tpu_custom_call.1} parent=23 // pred_fallthru
        _
      // Predicated region
      $region29: #{tpu_custom_call.1} parent=23 // pred_check
        %p298 = pneg %p76
      $region30: #{tpu_custom_call.1} parent=23 // pred_check_branch
        %300 = sbr.rel (%p298) target = $region32
      $region31: #{tpu_custom_call.1} parent=23 // pred_region
        %s301 = smul.u32 8, %s22
        %p302 = scmp.lt.s32.totalorder %s21, 1
        %s303 = scalar_select %p302, %s21, 1
        %p304 = scmp.lt.s32.totalorder %s301, 7
        %s305 = scalar_select %p304, %s301, 7
        %s306 = smul.addr %s303, 8
        %s307 = sadd.s32 %s305, %s306
        %s308 = smul.addr %s307, 4
        %s309 = scalar_lea.vmem %s1, %s308
        %s310 = smul.u32 8, %s22
      $region32: #{tpu_custom_call.1} parent=23 // pred_fallthru
        _
      // Predicated region
      $region33: #{tpu_custom_call.1} parent=23 // pred_check
        %p311 = pneg %p104
      $region34: #{tpu_custom_call.1} parent=23 // pred_check_branch
        %313 = sbr.rel (%p311) target = $region36
      $region35: #{tpu_custom_call.1} parent=23 // pred_region
        %s314 = smul.u32 8, %s22
        %p315 = scmp.lt.s32.totalorder %s21, 1
        %s316 = scalar_select %p315, %s21, 1
        %p317 = scmp.lt.s32.totalorder %s314, 7
        %s318 = scalar_select %p317, %s314, 7
        %s319 = smul.addr %s316, 8
        %s320 = sadd.s32 %s318, %s319
        %s321 = smul.addr %s320, 4
        %s322 = scalar_lea.vmem %s2, %s321
        %s323 = smul.u32 8, %s22
      $region36: #{tpu_custom_call.1} parent=23 // pred_fallthru
        _
      // Predicated region
      $region37: #{tpu_custom_call.1} parent=23 // pred_check
        %p324 = pneg %p132
      $region38: #{tpu_custom_call.1} parent=23 // pred_check_branch
        %326 = sbr.rel (%p324) target = $region40
      $region39: #{tpu_custom_call.1} parent=23 // pred_region
        %s327 = smul.u32 8, %s22
        %p328 = scmp.lt.s32.totalorder %s21, 1
        %s329 = scalar_select %p328, %s21, 1
        %p330 = scmp.lt.s32.totalorder %s327, 7
        %s331 = scalar_select %p330, %s327, 7
        %s332 = smul.addr %s329, 8
        %s333 = sadd.s32 %s331, %s332
        %s334 = smul.addr %s333, 4
        %s335 = scalar_lea.vmem %s3, %s334
        %s336 = smul.u32 8, %s22
      $region40: #{tpu_custom_call.1} parent=23 // pred_fallthru
        _
      // Predicated region
      $region41: #{tpu_custom_call.1} parent=23 // pred_check
        %p337 = pneg %p158
      $region42: #{tpu_custom_call.1} parent=23 // pred_check_branch
        %339 = sbr.rel (%p337) target = $region44
      $region43: #{tpu_custom_call.1} parent=23 // pred_region
        %p340 = scmp.lt.s32.totalorder %s21, 1
        %s341 = scalar_select %p340, %s21, 1
        %s342 = scalar_lea.vmem %s4, %s341
      $region44: #{tpu_custom_call.1} parent=23 // pred_fallthru
        _
      // Predicated region
      $region45: #{tpu_custom_call.1} parent=23 // pred_check
        %p343 = pneg %p184
      $region46: #{tpu_custom_call.1} parent=23 // pred_check_branch
        %345 = sbr.rel (%p343) target = $region48
      $region47: #{tpu_custom_call.1} parent=23 // pred_region
        %p346 = scmp.lt.s32.totalorder %s21, 1
        %s347 = scalar_select %p346, %s21, 1
        %s348 = scalar_lea.vmem %s5, %s347
      $region48: #{tpu_custom_call.1} parent=23 // pred_fallthru
        _
    $region24: #{tpu_custom_call.1} parent=5 // pred_fallthru
      _
    %p349 = scmp.le.s32.totalorder 1, %s14
    %p350 = scmp.lt.s32.totalorder %s14, 3
    %p351 = pnand %p349, %p350
    %p352 = pneg %p351
    // Predicated region
    $region49: #{tpu_custom_call.1} parent=5 // pred_check
      _
    $region50: #{tpu_custom_call.1} parent=5 // pred_check_branch
      %354 = sbr.rel (%p351) target = $region52
    $region51: #{tpu_custom_call.1} parent=5 // pred_region
      %s355 = ssub.s32 %s14, 1
      %s356 = smul.u32 8, %s24
      %p357 = scmp.lt.s32.totalorder %s23, 1
      %s358 = scalar_select %p357, %s23, 1
      %p359 = scmp.lt.s32.totalorder %s356, 7
      %s360 = scalar_select %p359, %s356, 7
      %s361 = smul.addr %s358, 8
      %s362 = sadd.s32 %s360, %s361
      %s363 = smul.addr %s362, 4
      %s364 = scalar_lea.vmem %s0, %s363
      %p365 = pneg %p54
      %p366 = pneg %p51
      %s367 = smul.u32 8, %s24
      %p368 = scmp.lt.s32.totalorder %s23, 1
      %s369 = scalar_select %p368, %s23, 1
      %p370 = scmp.lt.s32.totalorder %s367, 7
      %s371 = scalar_select %p370, %s367, 7
      %s372 = smul.addr %s369, 8
      %s373 = sadd.s32 %s371, %s372
      %s374 = smul.addr %s373, 4
      %s375 = scalar_lea.vmem %s1, %s374
      %p376 = pneg %p82
      %p377 = pneg %p79
      %s378 = smul.u32 8, %s24
      %p379 = scmp.lt.s32.totalorder %s23, 1
      %s380 = scalar_select %p379, %s23, 1
      %p381 = scmp.lt.s32.totalorder %s378, 7
      %s382 = scalar_select %p381, %s378, 7
      %s383 = smul.addr %s380, 8
      %s384 = sadd.s32 %s382, %s383
      %s385 = smul.addr %s384, 4
      %s386 = scalar_lea.vmem %s2, %s385
      %p387 = pneg %p110
      %p388 = pneg %p107
      %s389 = smul.u32 8, %s24
      %p390 = scmp.lt.s32.totalorder %s23, 1
      %s391 = scalar_select %p390, %s23, 1
      %p392 = scmp.lt.s32.totalorder %s389, 7
      %s393 = scalar_select %p392, %s389, 7
      %s394 = smul.addr %s391, 8
      %s395 = sadd.s32 %s393, %s394
      %s396 = smul.addr %s395, 4
      %s397 = scalar_lea.vmem %s3, %s396
      %p398 = pneg %p138
      %p399 = pneg %p135
      %p400 = scmp.lt.s32.totalorder %s23, 1
      %s401 = scalar_select %p400, %s23, 1
      %s402 = scalar_lea.vmem %s4, %s401
      %p403 = pneg %p164
      %p404 = pneg %p161
      %p405 = scmp.lt.s32.totalorder %s23, 1
      %s406 = scalar_select %p405, %s23, 1
      %s407 = scalar_lea.vmem %s5, %s406
      %p408 = pneg %p190
      %p409 = pneg %p187
      %p410 = pneg %p211
      %p411 = pneg %p208
      %p412 = pneg %p232
      %p413 = pneg %p229
      %p414 = pneg %p260
      %p415 = pneg %p257
      %s416 = smul.u32 8, %s24
      %p417 = scmp.lt.s32.totalorder %s23, 1
      %s418 = scalar_select %p417, %s23, 1
      %p419 = scmp.lt.s32.totalorder %s416, 7
      %s420 = scalar_select %p419, %s416, 7
      %s421 = smul.addr %s418, 8
      %s422 = sadd.s32 %s420, %s421
      %s423 = smul.addr %s422, 8
      %s424 = scalar_lea.vmem %s8, %s423
      %s425 = smul.u32 8, %s24
      %p426 = scmp.lt.s32.totalorder %s23, 1
      %s427 = scalar_select %p426, %s23, 1
      %p428 = scmp.lt.s32.totalorder %s425, 7
      %s429 = scalar_select %p428, %s425, 7
      %s430 = smul.addr %s427, 8
      %s431 = sadd.s32 %s429, %s430
      %s432 = smul.addr %s431, 4
      %s433 = scalar_lea.vmem %s0, %s432
      %s434 = smul.u32 8, %s24
      %s435 = smul.u32 8, %s24
      %p436 = scmp.lt.s32.totalorder %s23, 1
      %s437 = scalar_select %p436, %s23, 1
      %p438 = scmp.lt.s32.totalorder %s435, 7
      %s439 = scalar_select %p438, %s435, 7
      %s440 = smul.addr %s437, 8
      %s441 = sadd.s32 %s439, %s440
      %s442 = smul.addr %s441, 4
      %s443 = scalar_lea.vmem %s1, %s442
      %s444 = smul.u32 8, %s24
      %s445 = smul.u32 8, %s24
      %p446 = scmp.lt.s32.totalorder %s23, 1
      %s447 = scalar_select %p446, %s23, 1
      %p448 = scmp.lt.s32.totalorder %s445, 7
      %s449 = scalar_select %p448, %s445, 7
      %s450 = smul.addr %s447, 8
      %s451 = sadd.s32 %s449, %s450
      %s452 = smul.addr %s451, 4
      %s453 = scalar_lea.vmem %s2, %s452
      %s454 = smul.u32 8, %s24
      %s455 = smul.u32 8, %s24
      %p456 = scmp.lt.s32.totalorder %s23, 1
      %s457 = scalar_select %p456, %s23, 1
      %p458 = scmp.lt.s32.totalorder %s455, 7
      %s459 = scalar_select %p458, %s455, 7
      %s460 = smul.addr %s457, 8
      %s461 = sadd.s32 %s459, %s460
      %s462 = smul.addr %s461, 4
      %s463 = scalar_lea.vmem %s3, %s462
      %s464 = smul.u32 8, %s24
      %p465 = scmp.lt.s32.totalorder %s23, 1
      %s466 = scalar_select %p465, %s23, 1
      %s467 = scalar_lea.vmem %s4, %s466
      %p468 = scmp.lt.s32.totalorder %s23, 1
      %s469 = scalar_select %p468, %s23, 1
      %s470 = scalar_lea.vmem %s5, %s469
      %s471 = smul.u32 8, %s24
      %p472 = scmp.lt.s32.totalorder %s23, 1
      %s473 = scalar_select %p472, %s23, 1
      %p474 = scmp.lt.s32.totalorder %s471, 7
      %s475 = scalar_select %p474, %s471, 7
      %s476 = smul.addr %s473, 8
      %s477 = sadd.s32 %s475, %s476
      %s478 = smul.addr %s477, 8
      %s479 = scalar_lea.vmem %s8, %s478
      %s480 = smul.u32 8, %s24
      %v482 = vld [vmem:[%s467] sm:$0x1]
      %v483 = vld [vmem:[%s470] sm:$0x1]
      %v484 = vld [vmem:[%s433] sm:$0xf]
      %v485 = vld [vmem:[%s433 + $0x4] sm:$0xf]
      %v486 = vld [vmem:[%s433 + $0x8] sm:$0xf]
      %v487 = vld [vmem:[%s433 + $0xc] sm:$0xf]
      %v488 = vld [vmem:[%s433 + $0x10] sm:$0xf]
      %v489 = vld [vmem:[%s433 + $0x14] sm:$0xf]
      %v490 = vld [vmem:[%s433 + $0x18] sm:$0xf]
      %v491 = vld [vmem:[%s433 + $0x1c] sm:$0xf]
      %v492 = vunpack.c.l.bf16 %v484
      %v493 = vunpack.c.l.bf16 %v485
      %v494 = vunpack.c.l.bf16 %v486
      %v495 = vunpack.c.l.bf16 %v487
      %v496 = vunpack.c.l.bf16 %v488
      %v497 = vunpack.c.l.bf16 %v489
      %v498 = vunpack.c.l.bf16 %v490
      %v499 = vunpack.c.l.bf16 %v491
      %v500 = vld [vmem:[%s443] sm:$0xf]
      %v501 = vld [vmem:[%s443 + $0x4] sm:$0xf]
      %v502 = vld [vmem:[%s443 + $0x8] sm:$0xf]
      %v503 = vld [vmem:[%s443 + $0xc] sm:$0xf]
      %v504 = vld [vmem:[%s443 + $0x10] sm:$0xf]
      %v505 = vld [vmem:[%s443 + $0x14] sm:$0xf]
      %v506 = vld [vmem:[%s443 + $0x18] sm:$0xf]
      %v507 = vld [vmem:[%s443 + $0x1c] sm:$0xf]
      %v508 = vunpack.c.l.bf16 %v500
      %v509 = vunpack.c.l.bf16 %v501
      %v510 = vunpack.c.l.bf16 %v502
      %v511 = vunpack.c.l.bf16 %v503
      %v512 = vunpack.c.l.bf16 %v504
      %v513 = vunpack.c.l.bf16 %v505
      %v514 = vunpack.c.l.bf16 %v506
      %v515 = vunpack.c.l.bf16 %v507
      %v516 = vld [vmem:[%s453] sm:$0xf]
      %v517 = vld [vmem:[%s453 + $0x4] sm:$0xf]
      %v518 = vld [vmem:[%s453 + $0x8] sm:$0xf]
      %v519 = vld [vmem:[%s453 + $0xc] sm:$0xf]
      %v520 = vld [vmem:[%s453 + $0x10] sm:$0xf]
      %v521 = vld [vmem:[%s453 + $0x14] sm:$0xf]
      %v522 = vld [vmem:[%s453 + $0x18] sm:$0xf]
      %v523 = vld [vmem:[%s453 + $0x1c] sm:$0xf]
      %v524 = vunpack.c.l.bf16 %v516
      %v525 = vunpack.c.l.bf16 %v517
      %v526 = vunpack.c.l.bf16 %v518
      %v527 = vunpack.c.l.bf16 %v519
      %v528 = vunpack.c.l.bf16 %v520
      %v529 = vunpack.c.l.bf16 %v521
      %v530 = vunpack.c.l.bf16 %v522
      %v531 = vunpack.c.l.bf16 %v523
      %v532 = vld [vmem:[%s463] sm:$0xf]
      %v533 = vld [vmem:[%s463 + $0x4] sm:$0xf]
      %v534 = vld [vmem:[%s463 + $0x8] sm:$0xf]
      %v535 = vld [vmem:[%s463 + $0xc] sm:$0xf]
      %v536 = vld [vmem:[%s463 + $0x10] sm:$0xf]
      %v537 = vld [vmem:[%s463 + $0x14] sm:$0xf]
      %v538 = vld [vmem:[%s463 + $0x18] sm:$0xf]
      %v539 = vld [vmem:[%s463 + $0x1c] sm:$0xf]
      %v540 = vunpack.c.l.bf16 %v532
      %v541 = vunpack.c.l.bf16 %v533
      %v542 = vunpack.c.l.bf16 %v534
      %v543 = vunpack.c.l.bf16 %v535
      %v544 = vunpack.c.l.bf16 %v536
      %v545 = vunpack.c.l.bf16 %v537
      %v546 = vunpack.c.l.bf16 %v538
      %v547 = vunpack.c.l.bf16 %v539
      %v548 = vadd.f32 %v492, %v508
      %v549 = vadd.f32 %v493, %v509
      %v550 = vadd.f32 %v494, %v510
      %v551 = vadd.f32 %v495, %v511
      %v552 = vadd.f32 %v496, %v512
      %v553 = vadd.f32 %v497, %v513
      %v554 = vadd.f32 %v498, %v514
      %v555 = vadd.f32 %v499, %v515
      %v556 = vadd.f32 %v548, %v524
      %v557 = vadd.f32 %v549, %v525
      %v558 = vadd.f32 %v550, %v526
      %v559 = vadd.f32 %v551, %v527
      %v560 = vadd.f32 %v552, %v528
      %v561 = vadd.f32 %v553, %v529
      %v562 = vadd.f32 %v554, %v530
      %v563 = vadd.f32 %v555, %v531
      %v564 = vadd.f32 %v556, %v540
      %v565 = vadd.f32 %v557, %v541
      %v566 = vadd.f32 %v558, %v542
      %v567 = vadd.f32 %v559, %v543
      %v568 = vadd.f32 %v560, %v544
      %v569 = vadd.f32 %v561, %v545
      %v570 = vadd.f32 %v562, %v546
      %v571 = vadd.f32 %v563, %v547
      %v573 = vlaneseq
      %v574 = vshrl.u32 %v573, 7
      %v575 = vsub.s32 0, %v574
      %v576 = vrot.slane %v483, %v575
      %v578 = vmul.f32 %v564, %v576
      %v579 = vmul.f32 %v565, %v576
      %v580 = vmul.f32 %v566, %v576
      %v581 = vmul.f32 %v567, %v576
      %v582 = vmul.f32 %v568, %v576
      %v583 = vmul.f32 %v569, %v576
      %v584 = vmul.f32 %v570, %v576
      %v585 = vmul.f32 %v571, %v576
      %v587 = vlaneseq
      %v588 = vshrl.u32 %v587, 7
      %v589 = vsub.s32 0, %v588
      %v590 = vrot.slane %v482, %v589
      %v592 = vmul.f32 %v492, %v590
      %v593 = vmul.f32 %v493, %v590
      %v594 = vmul.f32 %v494, %v590
      %v595 = vmul.f32 %v495, %v590
      %v596 = vmul.f32 %v496, %v590
      %v597 = vmul.f32 %v497, %v590
      %v598 = vmul.f32 %v498, %v590
      %v599 = vmul.f32 %v499, %v590
      %v600 = vadd.f32 %v492, %v578
      %v601 = vadd.f32 %v493, %v579
      %v602 = vadd.f32 %v494, %v580
      %v603 = vadd.f32 %v495, %v581
      %v604 = vadd.f32 %v496, %v582
      %v605 = vadd.f32 %v497, %v583
      %v606 = vadd.f32 %v498, %v584
      %v607 = vadd.f32 %v499, %v585
      %v608 = vmul.f32 %v592, %v600
      %v609 = vmul.f32 %v593, %v601
      %v610 = vmul.f32 %v594, %v602
      %v611 = vmul.f32 %v595, %v603
      %v612 = vmul.f32 %v596, %v604
      %v613 = vmul.f32 %v597, %v605
      %v614 = vmul.f32 %v598, %v606
      %v615 = vmul.f32 %v599, %v607
      %616 = vrot.lane.b32.xlu0 %v590, 120
      %v617 = vpop.permute.xlu0 %616
      %v619 = vmul.f32 %v508, %v617
      %v620 = vmul.f32 %v509, %v617
      %v621 = vmul.f32 %v510, %v617
      %v622 = vmul.f32 %v511, %v617
      %v623 = vmul.f32 %v512, %v617
      %v624 = vmul.f32 %v513, %v617
      %v625 = vmul.f32 %v514, %v617
      %v626 = vmul.f32 %v515, %v617
      %v627 = vadd.f32 %v508, %v578
      %v628 = vadd.f32 %v509, %v579
      %v629 = vadd.f32 %v510, %v580
      %v630 = vadd.f32 %v511, %v581
      %v631 = vadd.f32 %v512, %v582
      %v632 = vadd.f32 %v513, %v583
      %v633 = vadd.f32 %v514, %v584
      %v634 = vadd.f32 %v515, %v585
      %v635 = vmul.f32 %v619, %v627
      %v636 = vmul.f32 %v620, %v628
      %v637 = vmul.f32 %v621, %v629
      %v638 = vmul.f32 %v622, %v630
      %v639 = vmul.f32 %v623, %v631
      %v640 = vmul.f32 %v624, %v632
      %v641 = vmul.f32 %v625, %v633
      %v642 = vmul.f32 %v626, %v634
      %643 = vrot.lane.b32.xlu0 %v590, 112
      %v644 = vpop.permute.xlu0 %643
      %v646 = vmul.f32 %v524, %v644
      %v647 = vmul.f32 %v525, %v644
      %v648 = vmul.f32 %v526, %v644
      %v649 = vmul.f32 %v527, %v644
      %v650 = vmul.f32 %v528, %v644
      %v651 = vmul.f32 %v529, %v644
      %v652 = vmul.f32 %v530, %v644
      %v653 = vmul.f32 %v531, %v644
      %v654 = vadd.f32 %v524, %v578
      %v655 = vadd.f32 %v525, %v579
      %v656 = vadd.f32 %v526, %v580
      %v657 = vadd.f32 %v527, %v581
      %v658 = vadd.f32 %v528, %v582
      %v659 = vadd.f32 %v529, %v583
      %v660 = vadd.f32 %v530, %v584
      %v661 = vadd.f32 %v531, %v585
      %v662 = vmul.f32 %v646, %v654
      %v663 = vmul.f32 %v647, %v655
      %v664 = vmul.f32 %v648, %v656
      %v665 = vmul.f32 %v649, %v657
      %v666 = vmul.f32 %v650, %v658
      %v667 = vmul.f32 %v651, %v659
      %v668 = vmul.f32 %v652, %v660
      %v669 = vmul.f32 %v653, %v661
      %670 = vrot.lane.b32.xlu0 %v590, 104
      %v671 = vpop.permute.xlu0 %670
      %v673 = vmul.f32 %v540, %v671
      %v674 = vmul.f32 %v541, %v671
      %v675 = vmul.f32 %v542, %v671
      %v676 = vmul.f32 %v543, %v671
      %v677 = vmul.f32 %v544, %v671
      %v678 = vmul.f32 %v545, %v671
      %v679 = vmul.f32 %v546, %v671
      %v680 = vmul.f32 %v547, %v671
      %v681 = vadd.f32 %v540, %v578
      %v682 = vadd.f32 %v541, %v579
      %v683 = vadd.f32 %v542, %v580
      %v684 = vadd.f32 %v543, %v581
      %v685 = vadd.f32 %v544, %v582
      %v686 = vadd.f32 %v545, %v583
      %v687 = vadd.f32 %v546, %v584
      %v688 = vadd.f32 %v547, %v585
      %v689 = vmul.f32 %v673, %v681
      %v690 = vmul.f32 %v674, %v682
      %v691 = vmul.f32 %v675, %v683
      %v692 = vmul.f32 %v676, %v684
      %v693 = vmul.f32 %v677, %v685
      %v694 = vmul.f32 %v678, %v686
      %v695 = vmul.f32 %v679, %v687
      %v696 = vmul.f32 %v680, %v688
      %705 = vrot.lane.b32.xlu0 %v635, 8
      %v706 = vpop.permute.xlu0 %705
      %707 = vrot.lane.b32.xlu0 %v636, 8
      %v708 = vpop.permute.xlu0 %707
      %709 = vrot.lane.b32.xlu0 %v637, 8
      %v710 = vpop.permute.xlu0 %709
      %711 = vrot.lane.b32.xlu0 %v638, 8
      %v712 = vpop.permute.xlu0 %711
      %713 = vrot.lane.b32.xlu0 %v639, 8
      %v714 = vpop.permute.xlu0 %713
      %715 = vrot.lane.b32.xlu0 %v640, 8
      %v716 = vpop.permute.xlu0 %715
      %717 = vrot.lane.b32.xlu0 %v641, 8
      %v718 = vpop.permute.xlu0 %717
      %719 = vrot.lane.b32.xlu0 %v642, 8
      %v720 = vpop.permute.xlu0 %719
      %737 = vrot.lane.b32.xlu0 %v662, 16
      %v738 = vpop.permute.xlu0 %737
      %739 = vrot.lane.b32.xlu0 %v663, 16
      %v740 = vpop.permute.xlu0 %739
      %741 = vrot.lane.b32.xlu0 %v664, 16
      %v742 = vpop.permute.xlu0 %741
      %743 = vrot.lane.b32.xlu0 %v665, 16
      %v744 = vpop.permute.xlu0 %743
      %745 = vrot.lane.b32.xlu0 %v666, 16
      %v746 = vpop.permute.xlu0 %745
      %747 = vrot.lane.b32.xlu0 %v667, 16
      %v748 = vpop.permute.xlu0 %747
      %749 = vrot.lane.b32.xlu0 %v668, 16
      %v750 = vpop.permute.xlu0 %749
      %751 = vrot.lane.b32.xlu0 %v669, 16
      %v752 = vpop.permute.xlu0 %751
      %769 = vrot.lane.b32.xlu0 %v689, 24
      %v770 = vpop.permute.xlu0 %769
      %771 = vrot.lane.b32.xlu0 %v690, 24
      %v772 = vpop.permute.xlu0 %771
      %773 = vrot.lane.b32.xlu0 %v691, 24
      %v774 = vpop.permute.xlu0 %773
      %775 = vrot.lane.b32.xlu0 %v692, 24
      %v776 = vpop.permute.xlu0 %775
      %777 = vrot.lane.b32.xlu0 %v693, 24
      %v778 = vpop.permute.xlu0 %777
      %779 = vrot.lane.b32.xlu0 %v694, 24
      %v780 = vpop.permute.xlu0 %779
      %781 = vrot.lane.b32.xlu0 %v695, 24
      %v782 = vpop.permute.xlu0 %781
      %783 = vrot.lane.b32.xlu0 %v696, 24
      %v784 = vpop.permute.xlu0 %783
      %vm793 = vcmask 64512
      %v794 = vsel %vm793, %v608, %v706
      %v795 = vsel %vm793, %v609, %v708
      %v796 = vsel %vm793, %v610, %v710
      %v797 = vsel %vm793, %v611, %v712
      %v798 = vsel %vm793, %v612, %v714
      %v799 = vsel %vm793, %v613, %v716
      %v800 = vsel %vm793, %v614, %v718
      %v801 = vsel %vm793, %v615, %v720
      %vm802 = vcmask 130048
      %v803 = vsel %vm802, %v794, %v738
      %v804 = vsel %vm802, %v795, %v740
      %v805 = vsel %vm802, %v796, %v742
      %v806 = vsel %vm802, %v797, %v744
      %v807 = vsel %vm802, %v798, %v746
      %v808 = vsel %vm802, %v799, %v748
      %v809 = vsel %vm802, %v800, %v750
      %v810 = vsel %vm802, %v801, %v752
      %vm811 = vcmask 195584
      %v812 = vsel %vm811, %v803, %v770
      %v813 = vsel %vm811, %v804, %v772
      %v814 = vsel %vm811, %v805, %v774
      %v815 = vsel %vm811, %v806, %v776
      %v816 = vsel %vm811, %v807, %v778
      %v817 = vsel %vm811, %v808, %v780
      %v818 = vsel %vm811, %v809, %v782
      %v819 = vsel %vm811, %v810, %v784
      %v820 = vpack.c.bf16 %v813, %v812
      %v821 = vpack.c.bf16 %v815, %v814
      %v822 = vpack.c.bf16 %v817, %v816
      %v823 = vpack.c.bf16 %v819, %v818
      %v824 = vld [vmem:[%s6] sm:$0xf]
      %v825 = vld [vmem:[%s6 + $0x4] sm:$0xf]
      %v826 = vld [vmem:[%s6 + $0x8] sm:$0xf]
      %v827 = vld [vmem:[%s6 + $0xc] sm:$0xf]
      %v828 = vld [vmem:[%s7] sm:$0x1]
      %v830 = vlaneseq
      %v831 = vshrl.u32 %v830, 7
      %v832 = vsub.s32 0, %v831
      %v833 = vrot.slane %v828, %v832
      %v839 = vunpack.c.l.b16 %v824
      %v840 = vunpack.c.l.b16 %v825
      %v841 = vunpack.c.l.b16 %v826
      %v842 = vunpack.c.l.b16 %v827
      %v843 = vpack.c.b16 %v840, %v839
      %v844 = vpack.c.b16 %v842, %v841
      %vm847 = vcmask 261120
      %v849 = vsel %vm847, %v820, 0
      %v852 = vsel %vm847, %v821, 0
      %v855 = vsel %vm847, %v822, 0
      %v858 = vsel %vm847, %v823, 0
      %860 = vmatprep.subr.bf16.mxu0 0
      %861 = vmatpush1.bf16.msra.mxu0 %v843
      %862 = vmatprep.subr.bf16.mxu0 0
      %863 = vmatpush1.bf16.msra.mxu0 %v844
      %864 = vmatprep.subr.bf16.mxu0 0
      %865 = vmatpush1.bf16.msra.mxu0 0
      %866 = vmatprep.subr.bf16.mxu0 0
      %867 = vmatpush1.bf16.msra.mxu0 0
      %868 = vmatprep.subr.bf16.mxu0 0
      %869 = vmatpush1.bf16.msra.mxu0 0
      %870 = vmatprep.subr.bf16.mxu0 0
      %871 = vmatpush1.bf16.msra.mxu0 0
      %872 = vmatprep.subr.bf16.mxu0 0
      %873 = vmatpush1.bf16.msra.mxu0 0
      %874 = vmatprep.subr.bf16.mxu0 0
      %875 = vmatpush1.bf16.msra.mxu0 0
      %876 = vmatprep.subr.bf16.mxu0 0
      %877 = vmatpush1.bf16.msra.mxu0 0
      %878 = vmatprep.subr.bf16.mxu0 0
      %879 = vmatpush1.bf16.msra.mxu0 0
      %880 = vmatprep.subr.bf16.mxu0 0
      %881 = vmatpush1.bf16.msra.mxu0 0
      %882 = vmatprep.subr.bf16.mxu0 0
      %883 = vmatpush1.bf16.msra.mxu0 0
      %884 = vmatprep.subr.bf16.mxu0 0
      %885 = vmatpush1.bf16.msra.mxu0 0
      %886 = vmatprep.subr.bf16.mxu0 0
      %887 = vmatpush1.bf16.msra.mxu0 0
      %888 = vmatprep.subr.bf16.mxu0 0
      %889 = vmatpush1.bf16.msra.mxu0 0
      %890 = vmatprep.subr.bf16.mxu0 0
      %891 = vmatpush1.bf16.msra.mxu0 0
      %892 = vmatprep.mubr.bf16.mxu0 0
      %893 = vmatmul.mubr.bf16.gmra.mrb[0].mxu0 %v849
      %v894 = vpop.f32.mrb[0].mxu0
      %v895 = vadd.f32 %v833, %v894
      %v896 = vpop.f32.mrb[0].mxu0
      %v897 = vpop.f32.mrb[0].mxu0
      %v898 = vadd.f32 %v833, %v897
      %v899 = vpop.f32.mrb[0].mxu0
      %900 = vmatprep.mubr.bf16.mxu0 0
      %901 = vmatmul.mubr.bf16.gmra.mrb[0].mxu0 %v852
      %v902 = vpop.f32.mrb[0].mxu0
      %v903 = vadd.f32 %v833, %v902
      %v904 = vpop.f32.mrb[0].mxu0
      %v905 = vpop.f32.mrb[0].mxu0
      %v906 = vadd.f32 %v833, %v905
      %v907 = vpop.f32.mrb[0].mxu0
      %908 = vmatprep.mubr.bf16.mxu0 0
      %909 = vmatmul.mubr.bf16.gmra.mrb[0].mxu0 %v855
      %v910 = vpop.f32.mrb[0].mxu0
      %v911 = vadd.f32 %v833, %v910
      %v912 = vpop.f32.mrb[0].mxu0
      %v913 = vpop.f32.mrb[0].mxu0
      %v914 = vadd.f32 %v833, %v913
      %v915 = vpop.f32.mrb[0].mxu0
      %916 = vmatprep.mubr.bf16.mxu0 0
      %917 = vmatmul.mubr.bf16.gmra.mrb[0].mxu0 %v858
      %v918 = vpop.f32.mrb[0].mxu0
      %v919 = vadd.f32 %v833, %v918
      %v920 = vpop.f32.mrb[0].mxu0
      %v921 = vpop.f32.mrb[0].mxu0
      %v922 = vadd.f32 %v833, %v921
      %v923 = vpop.f32.mrb[0].mxu0
      %924 = vdwg.mxu0
      %925 = vst.msk [vmem:[%s479] sm:$0xff] %vm802, %v895
      %926 = vst.msk [vmem:[%s479 + $0x8] sm:$0xff] %vm802, %v898
      %927 = vst.msk [vmem:[%s479 + $0x10] sm:$0xff] %vm802, %v903
      %928 = vst.msk [vmem:[%s479 + $0x18] sm:$0xff] %vm802, %v906
      %929 = vst.msk [vmem:[%s479 + $0x20] sm:$0xff] %vm802, %v911
      %930 = vst.msk [vmem:[%s479 + $0x28] sm:$0xff] %vm802, %v914
      %931 = vst.msk [vmem:[%s479 + $0x30] sm:$0xff] %vm802, %v919
      %932 = vst.msk [vmem:[%s479 + $0x38] sm:$0xff] %vm802, %v922
      %s933 = smul.u32 8, %s24
      %p934 = scmp.lt.s32.totalorder %s23, 1
      %s935 = scalar_select %p934, %s23, 1
      %p936 = scmp.lt.s32.totalorder %s933, 7
      %s937 = scalar_select %p936, %s933, 7
      %s938 = smul.addr %s935, 8
      %s939 = sadd.s32 %s937, %s938
      %s940 = smul.addr %s939, 8
      %s941 = scalar_lea.vmem %s8, %s940
      // Predicated region
      $region53: #{tpu_custom_call.1} parent=51 // pred_check
        %p942 = pneg %p257
      $region54: #{tpu_custom_call.1} parent=51 // pred_check_branch
        %944 = sbr.rel (%p942) target = $region56
      $region55: #{tpu_custom_call.1} parent=51 // pred_region
        %s945 = smul.u32 8, %s24
      $region56: #{tpu_custom_call.1} parent=51 // pred_fallthru
        _
    $region52: #{tpu_custom_call.1} parent=5 // pred_fallthru
      _
    %p946 = scmp.le.s32.totalorder 2, %s14
    // Predicated region
    $region57: #{tpu_custom_call.1} parent=5 // pred_check
      %p947 = pneg %p946
    $region58: #{tpu_custom_call.1} parent=5 // pred_check_branch
      %949 = sbr.rel (%p947) target = $region60
    $region59: #{tpu_custom_call.1} parent=5 // pred_region
      %s950 = ssub.s32 %s14, 2
      // Predicated region
      $region61: #{tpu_custom_call.1} parent=59 // pred_check
        %p951 = pneg %p263
      $region62: #{tpu_custom_call.1} parent=59 // pred_check_branch
        %953 = sbr.rel (%p951) target = $region64
      $region63: #{tpu_custom_call.1} parent=59 // pred_region
        %s954 = smul.u32 8, %s26
        %p955 = scmp.lt.s32.totalorder %s25, 1
        %s956 = scalar_select %p955, %s25, 1
        %p957 = scmp.lt.s32.totalorder %s954, 7
        %s958 = scalar_select %p957, %s954, 7
        %s959 = smul.addr %s956, 8
        %s960 = sadd.s32 %s958, %s959
        %s961 = smul.addr %s960, 8
        %s962 = scalar_lea.vmem %s8, %s961
      $region64: #{tpu_custom_call.1} parent=59 // pred_fallthru
        _
    $region60: #{tpu_custom_call.1} parent=5 // pred_fallthru
      _
  $region6: #{tpu_custom_call.1} parent=0 // loop_footer
    %s18 = sadd.s32 1, %s14
  $region7: #{tpu_custom_call.1} parent=0 // loop_footer_branch
    %13 = sbr.rel target = $region3
  $region8: #{tpu_custom_call.1} parent=0 // loop_exit
    _

</llo_original>
